<compile_context>
chip_gen: v6e
topology: v6e:2x2x1
jax: 0.10.0
libtpu: 0.0.40
codegen_flags: <defaults>
</compile_context>

<pallas_src>
import functools

import jax
import jax.numpy as jnp
from jax import lax
from jax.experimental import pallas as pl
from jax.experimental.pallas import tpu as pltpu

LANE = 128        # lane-dense padded width; keep 128 on v5e (4x128^2 MXU).  Only move
                  # to 256 on v6e/v7x if real layer widths reach >=128-256.
_TILE_CAP = 1024  # max batch-tile rows (amortizes per-step overhead, fills MXU M dim)


def _round_up(x, m):
    return (x + m - 1) // m * m


def _choose_batch_tile(batch, cap=_TILE_CAP):
    """Pick the batch tile so padding is minimal (not round_up(batch, cap))."""
    n_tiles = max(1, -(-batch // cap))           # ceil(batch / cap)
    tb = _round_up(-(-batch // n_tiles), 8)      # rows per tile, 8-sublane aligned
    b_pad = _round_up(batch, tb)
    return tb, b_pad


def pack_params(weights, biases, mxu_dtype=jnp.bfloat16):
    """Pack per-layer weights/biases into lane-dense slabs.

    Call ONCE per parameter set (hoisted out of the per-forward path): the packing is
    a chain of dynamic-update-slices + casts that would otherwise serialize in front
    of every pallas_call.
    Returns (w_slab (L, D, D) mxu_dtype, b_slab (L, 1, D) f32, d_pad).
    """
    n_layers = len(weights)
    dims = [weights[0].shape[0]] + [w.shape[1] for w in weights]
    d_pad = _round_up(max(dims), LANE)
    w_slab = jnp.zeros((n_layers, d_pad, d_pad), mxu_dtype)
    b_slab = jnp.zeros((n_layers, 1, d_pad), jnp.float32)
    for i, (w, b) in enumerate(zip(weights, biases)):
        w_slab = w_slab.at[i, : w.shape[0], : w.shape[1]].set(w.astype(mxu_dtype))
        b_slab = b_slab.at[i, 0, : b.shape[0]].set(b.astype(jnp.float32))
    return w_slab, b_slab, d_pad


def _mlp_softmax_kernel(n_layers, out_dim, x_ref, w_ref, b_ref, o_ref):
    """Fused padded MLP + masked softmax for one (TB, D) batch tile.

    x_ref: (TB, D) bf16     w_ref: (L, D, D) bf16 (VMEM-resident across grid steps)
    b_ref: (L, 1, D) f32    o_ref: (TB, D) out_dtype (padded classes -> prob 0)
    """
    h = x_ref[...]                                            # bf16 (TB, D)
    for i in range(n_layers):                                 # statically unrolled
        z = jnp.dot(h, w_ref[i], preferred_element_type=jnp.float32) + b_ref[i]
        if i < n_layers - 1:
            h = jnp.maximum(z, 0.0).astype(jnp.bfloat16)      # ReLU, bf16 back to MXU
        else:
            h = z                                             # f32 logits

    # Mask padded class columns so they take exactly 0 probability mass.
    col = lax.broadcasted_iota(jnp.int32, h.shape, 1)
    logits = jnp.where(col < out_dim, h, jnp.float32(-1e30))

    # Numerically stable softmax over the class (lane) dimension, exact normalization.
    m = jnp.max(logits, axis=-1, keepdims=True)
    e = jnp.exp(logits - m)
    s = jnp.sum(e, axis=-1, keepdims=True)
    o_ref[...] = (e / s).astype(o_ref.dtype)


def nn_classification_forward(x, w_slab, b_slab, *, out_dim,
                              block_batch=None, out_dtype=jnp.bfloat16):
    """Forward pass of NNClassificationModel.

    x: (batch, input_node_size); w_slab/b_slab from pack_params().
    Returns (batch, out_dim) class probabilities in `out_dtype`.
    """
    batch, in_dim = x.shape
    n_layers, d_pad, _ = w_slab.shape

    if block_batch is None:
        tb, b_pad = _choose_batch_tile(batch)
    else:
        tb = _round_up(block_batch, 8)
        b_pad = _round_up(batch, tb)
    # TODO(synk): on v7x, prefer an even number of grid steps for large batches so the
    # "parallel" batch axis feeds both TensorCores.

    # Pad x to the lane-dense width / batch tile (bf16 MXU operand).
    x_pad = jnp.zeros((b_pad, d_pad), jnp.bfloat16)
    x_pad = x_pad.at[:batch, :in_dim].set(x.astype(jnp.bfloat16))

    kernel = functools.partial(_mlp_softmax_kernel, n_layers, out_dim)

    out_bytes = b_pad * d_pad * jnp.dtype(out_dtype).itemsize
    cost = pl.CostEstimate(
        flops=2 * b_pad * n_layers * d_pad * d_pad,
        transcendentals=b_pad * d_pad,                      # exp in the softmax
        bytes_accessed=x_pad.size * 2 + w_slab.size * 2 + b_slab.size * 4 + out_bytes,
    )

    grid = (b_pad // tb,)
    out_padded = pl.pallas_call(
        kernel,
        out_shape=jax.ShapeDtypeStruct((b_pad, d_pad), out_dtype),
        grid=grid,
        in_specs=[
            pl.BlockSpec((tb, d_pad), lambda i: (i, 0)),                  # x tile (pipelined)
            pl.BlockSpec((n_layers, d_pad, d_pad), lambda i: (0, 0, 0)),  # weights (resident)
            pl.BlockSpec((n_layers, 1, d_pad), lambda i: (0, 0, 0)),      # biases (resident)
        ],
        out_specs=pl.BlockSpec((tb, d_pad), lambda i: (i, 0)),
        compiler_params=pltpu.CompilerParams(
            dimension_semantics=("parallel",),
            vmem_limit_bytes=32 * 1024 * 1024,   # ample at D=128; raise if D is scaled up
        ),
        cost_estimate=cost,
    )(x_pad, w_slab, b_slab)

    return out_padded[:batch, :out_dim]


def _reference_forward(x, weights, biases):
    """Plain-JAX f32 reference for validation."""
    h = x.astype(jnp.float32)
    depth = len(weights) - 1
    for i, (w, b) in enumerate(zip(weights, biases)):
        h = h @ w + b
        if i < depth:
            h = jnp.maximum(h, 0.0)
    return jax.nn.softmax(h, axis=-1)


if __name__ == "__main__":
    # Mirrors the PyTorch module's __init__ hyperparameters (small demo sizes).
    config = {
        "input_node_size": 16,
        "output_node_size": 8,
        "hidden_layer_width": 32,
        "model_depth": 3,
    }
    batch = 256

    key = jax.random.PRNGKey(0)
    n_param_keys = 2 * (config["model_depth"] + 1)
    keys = jax.random.split(key, n_param_keys + 1)

    # Deterministic parameter init (uniform, like PyTorch's default Linear init).
    weights, biases = [], []
    in_dim = config["input_node_size"]
    layer_outs = [config["hidden_layer_width"]] * config["model_depth"] \
                 + [config["output_node_size"]]
    k_idx = 0
    for out_d in layer_outs:
        bound = in_dim ** -0.5
        weights.append(jax.random.uniform(keys[k_idx], (in_dim, out_d),
                                          jnp.float32, -bound, bound)); k_idx += 1
        biases.append(jax.random.uniform(keys[k_idx], (out_d,),
                                         jnp.float32, -bound, bound)); k_idx += 1
        in_dim = out_d

    x = jax.random.normal(keys[k_idx], (batch, config["input_node_size"]), jnp.float32)
    out_dim = config["output_node_size"]

    # Pack parameters ONCE (hoisted out of the per-call path).
    w_slab, b_slab, _ = pack_params(weights, biases)

    # Default config: minimal-padding batch tile (single grid step for this batch).
    out = nn_classification_forward(x, w_slab, b_slab, out_dim=out_dim)
    out = jax.block_until_ready(out)

    ref = _reference_forward(x, weights, biases)
    assert out.shape == (batch, out_dim)
    out_f32 = out.astype(jnp.float32)
    # Tolerances account for bf16 MXU operands and bf16 output (f32 accumulation kept).
    assert jnp.allclose(out_f32, ref, atol=3e-2, rtol=3e-2), "mismatch vs reference"
    assert jnp.allclose(jnp.sum(out_f32, axis=-1), 1.0, atol=5e-3), \
        "softmax rows must sum to ~1"

    # Exercise the multi-step pipelined grid path (2 steps of 128 rows); this is a
    # correctness check of the pipeline, not a performance configuration.
    out2 = jax.block_until_ready(
        nn_classification_forward(x, w_slab, b_slab, out_dim=out_dim, block_batch=128))
    assert jnp.allclose(out2.astype(jnp.float32), ref, atol=3e-2, rtol=3e-2), \
        "mismatch vs reference (2-step grid)"

    print("KERNEL_OK")
</pallas_src>

<mosaic_0001>
module attributes {stable_mosaic.version = 11 : i64} {
  func.func @_mlp_softmax_kernel(%arg0: i32, %arg1: memref<256x128xbf16, #tpu.memory_space<vmem>>, %arg2: memref<4x128x128xbf16, #tpu.memory_space<vmem>>, %arg3: memref<4x1x128xf32, #tpu.memory_space<vmem>>, %arg4: memref<256x128xbf16, #tpu.memory_space<vmem>>) attributes {dimension_semantics = [#tpu.dimension_semantics<parallel>], iteration_bounds = array<i64: 1>, scalar_prefetch = 0 : i64, scratch_operands = 0 : i64, tpu.core_type = #tpu.core_type<tc>, window_params = [{transform_indices = @transform_0, window_bounds = array<i64: 256, 128>}, {pipeline_mode = #tpu.pipeline_mode<synchronous>, transform_indices = @transform_1, window_bounds = array<i64: 4, 128, 128>}, {pipeline_mode = #tpu.pipeline_mode<synchronous>, transform_indices = @transform_2, window_bounds = array<i64: 4, 1, 128>}, {transform_indices = @transform_3, window_bounds = array<i64: 256, 128>}]} {
    %c0 = arith.constant 0 : index
    %c0_0 = arith.constant 0 : index
    %0 = vector.load %arg1[%c0, %c0_0] : memref<256x128xbf16, #tpu.memory_space<vmem>>, vector<256x128xbf16>
    %c0_1 = arith.constant 0 : index
    %c0_2 = arith.constant 0 : index
    %c0_3 = arith.constant 0 : index
    %1 = vector.load %arg2[%c0_1, %c0_2, %c0_3] : memref<4x128x128xbf16, #tpu.memory_space<vmem>>, vector<1x128x128xbf16>
    %2 = vector.shape_cast %1 : vector<1x128x128xbf16> to vector<128x128xbf16>
    %cst = arith.constant dense<0.000000e+00> : vector<256x128xf32>
    %3 = tpu.matmul %0, %2, %cst {dimension_numbers = #tpu.dot_dimension_numbers<[1], [0], [0], [1], [0, 0, 1, 1], [], []>} : vector<256x128xbf16>, vector<128x128xbf16>, vector<256x128xf32> -> vector<256x128xf32>
    %c0_4 = arith.constant 0 : index
    %c0_5 = arith.constant 0 : index
    %c0_6 = arith.constant 0 : index
    %4 = vector.load %arg3[%c0_4, %c0_5, %c0_6] : memref<4x1x128xf32, #tpu.memory_space<vmem>>, vector<1x1x128xf32>
    %5 = vector.shape_cast %4 : vector<1x1x128xf32> to vector<1x128xf32>
    %6 = vector.broadcast %5 : vector<1x128xf32> to vector<256x128xf32>
    %7 = arith.addf %3, %6 : vector<256x128xf32>
    %cst_7 = arith.constant 0.000000e+00 : f32
    %8 = vector.broadcast %cst_7 : f32 to vector<256x128xf32>
    %9 = arith.maximumf %7, %8 : vector<256x128xf32>
    %10 = arith.truncf %9 : vector<256x128xf32> to vector<256x128xbf16>
    %c1 = arith.constant 1 : index
    %c0_8 = arith.constant 0 : index
    %c0_9 = arith.constant 0 : index
    %11 = vector.load %arg2[%c1, %c0_8, %c0_9] : memref<4x128x128xbf16, #tpu.memory_space<vmem>>, vector<1x128x128xbf16>
    %12 = vector.shape_cast %11 : vector<1x128x128xbf16> to vector<128x128xbf16>
    %cst_10 = arith.constant dense<0.000000e+00> : vector<256x128xf32>
    %13 = tpu.matmul %10, %12, %cst_10 {dimension_numbers = #tpu.dot_dimension_numbers<[1], [0], [0], [1], [0, 0, 1, 1], [], []>} : vector<256x128xbf16>, vector<128x128xbf16>, vector<256x128xf32> -> vector<256x128xf32>
    %c1_11 = arith.constant 1 : index
    %c0_12 = arith.constant 0 : index
    %c0_13 = arith.constant 0 : index
    %14 = vector.load %arg3[%c1_11, %c0_12, %c0_13] : memref<4x1x128xf32, #tpu.memory_space<vmem>>, vector<1x1x128xf32>
    %15 = vector.shape_cast %14 : vector<1x1x128xf32> to vector<1x128xf32>
    %16 = vector.broadcast %15 : vector<1x128xf32> to vector<256x128xf32>
    %17 = arith.addf %13, %16 : vector<256x128xf32>
    %cst_14 = arith.constant 0.000000e+00 : f32
    %18 = vector.broadcast %cst_14 : f32 to vector<256x128xf32>
    %19 = arith.maximumf %17, %18 : vector<256x128xf32>
    %20 = arith.truncf %19 : vector<256x128xf32> to vector<256x128xbf16>
    %c2 = arith.constant 2 : index
    %c0_15 = arith.constant 0 : index
    %c0_16 = arith.constant 0 : index
    %21 = vector.load %arg2[%c2, %c0_15, %c0_16] : memref<4x128x128xbf16, #tpu.memory_space<vmem>>, vector<1x128x128xbf16>
    %22 = vector.shape_cast %21 : vector<1x128x128xbf16> to vector<128x128xbf16>
    %cst_17 = arith.constant dense<0.000000e+00> : vector<256x128xf32>
    %23 = tpu.matmul %20, %22, %cst_17 {dimension_numbers = #tpu.dot_dimension_numbers<[1], [0], [0], [1], [0, 0, 1, 1], [], []>} : vector<256x128xbf16>, vector<128x128xbf16>, vector<256x128xf32> -> vector<256x128xf32>
    %c2_18 = arith.constant 2 : index
    %c0_19 = arith.constant 0 : index
    %c0_20 = arith.constant 0 : index
    %24 = vector.load %arg3[%c2_18, %c0_19, %c0_20] : memref<4x1x128xf32, #tpu.memory_space<vmem>>, vector<1x1x128xf32>
    %25 = vector.shape_cast %24 : vector<1x1x128xf32> to vector<1x128xf32>
    %26 = vector.broadcast %25 : vector<1x128xf32> to vector<256x128xf32>
    %27 = arith.addf %23, %26 : vector<256x128xf32>
    %cst_21 = arith.constant 0.000000e+00 : f32
    %28 = vector.broadcast %cst_21 : f32 to vector<256x128xf32>
    %29 = arith.maximumf %27, %28 : vector<256x128xf32>
    %30 = arith.truncf %29 : vector<256x128xf32> to vector<256x128xbf16>
    %c3 = arith.constant 3 : index
    %c0_22 = arith.constant 0 : index
    %c0_23 = arith.constant 0 : index
    %31 = vector.load %arg2[%c3, %c0_22, %c0_23] : memref<4x128x128xbf16, #tpu.memory_space<vmem>>, vector<1x128x128xbf16>
    %32 = vector.shape_cast %31 : vector<1x128x128xbf16> to vector<128x128xbf16>
    %cst_24 = arith.constant dense<0.000000e+00> : vector<256x128xf32>
    %33 = tpu.matmul %30, %32, %cst_24 {dimension_numbers = #tpu.dot_dimension_numbers<[1], [0], [0], [1], [0, 0, 1, 1], [], []>} : vector<256x128xbf16>, vector<128x128xbf16>, vector<256x128xf32> -> vector<256x128xf32>
    %c3_25 = arith.constant 3 : index
    %c0_26 = arith.constant 0 : index
    %c0_27 = arith.constant 0 : index
    %34 = vector.load %arg3[%c3_25, %c0_26, %c0_27] : memref<4x1x128xf32, #tpu.memory_space<vmem>>, vector<1x1x128xf32>
    %35 = vector.shape_cast %34 : vector<1x1x128xf32> to vector<1x128xf32>
    %36 = vector.broadcast %35 : vector<1x128xf32> to vector<256x128xf32>
    %37 = arith.addf %33, %36 : vector<256x128xf32>
    %38 = tpu.iota {dimensions = array<i32: 1>} : vector<256x128xi32>
    %c8_i32 = arith.constant 8 : i32
    %39 = vector.broadcast %c8_i32 : i32 to vector<256x128xi32>
    %40 = arith.cmpi slt, %38, %39 : vector<256x128xi32>
    %cst_28 = arith.constant -1.000000e+30 : f32
    %41 = vector.broadcast %cst_28 : f32 to vector<256x128xf32>
    %42 = arith.select %40, %37, %41 : vector<256x128xi1>, vector<256x128xf32>
    %cst_29 = arith.constant dense<0xFF800000> : vector<256xf32>
    %43 = vector.multi_reduction <maximumf>, %42, %cst_29 [1] : vector<256x128xf32> to vector<256xf32>
    %44 = vector.shape_cast %43 : vector<256xf32> to vector<256x1xf32>
    %45 = vector.broadcast %44 : vector<256x1xf32> to vector<256x128xf32>
    %46 = arith.subf %42, %45 : vector<256x128xf32>
    %47 = math.exp %46 : vector<256x128xf32>
    %cst_30 = arith.constant dense<0.000000e+00> : vector<256xf32>
    %48 = vector.multi_reduction <add>, %47, %cst_30 [1] : vector<256x128xf32> to vector<256xf32>
    %49 = vector.shape_cast %48 : vector<256xf32> to vector<256x1xf32>
    %50 = vector.broadcast %49 : vector<256x1xf32> to vector<256x128xf32>
    %51 = arith.divf %47, %50 : vector<256x128xf32>
    %52 = arith.truncf %51 : vector<256x128xf32> to vector<256x128xbf16>
    %c0_31 = arith.constant 0 : index
    %c0_32 = arith.constant 0 : index
    %53 = vector.load %arg4[%c0_31, %c0_32] : memref<256x128xbf16, #tpu.memory_space<vmem>>, vector<256x128xbf16>
    tpu.vector_store %arg4[%c0_31, %c0_32], %52 {strides = array<i32>} : memref<256x128xbf16, #tpu.memory_space<vmem>>, vector<256x128xbf16>,
    return
  }
  func.func @transform_0(%arg0: i32) -> (i32, i32) {
    %c0_i32 = arith.constant 0 : i32
    %c0_i32_0 = arith.constant 0 : i32
    return %arg0, %c0_i32 : i32, i32
  }
  func.func @transform_1(%arg0: i32) -> (i32, i32, i32) {
    %c0_i32 = arith.constant 0 : i32
    %c0_i32_0 = arith.constant 0 : i32
    %c0_i32_1 = arith.constant 0 : i32
    %c0_i32_2 = arith.constant 0 : i32
    return %c0_i32, %c0_i32_0, %c0_i32_1 : i32, i32, i32
  }
  func.func @transform_2(%arg0: i32) -> (i32, i32, i32) {
    %c0_i32 = arith.constant 0 : i32
    %c0_i32_0 = arith.constant 0 : i32
    %c0_i32_1 = arith.constant 0 : i32
    %c0_i32_2 = arith.constant 0 : i32
    return %c0_i32, %c0_i32_0, %c0_i32_1 : i32, i32, i32
  }
  func.func @transform_3(%arg0: i32) -> (i32, i32) {
    %c0_i32 = arith.constant 0 : i32
    %c0_i32_0 = arith.constant 0 : i32
    return %arg0, %c0_i32 : i32, i32
  }
}

</mosaic_0001>

<llo_original>
// kernel: tpu_custom_call.1
$region0: #{tpu_custom_call.1}
  #allocation0 [shape = 'u32[]', space=smem, size = 0x4, offset = 0x4, fixed_abs, tag = 'smem constant byte address 0x4 - core index']
  #allocation1 [shape = 'u32[144,128]{1,0:T(1,128)}', space=vmem, size = 0x12000, scoped, tag = 'internal scratch']
  %s0 = inlined_call_operand.hbm [shape: bf16[256,128], index: 0, kind: input, shape index: {}]
  %s1 = inlined_call_operand.hbm [shape: bf16[4,128,128], index: 1, kind: input, shape index: {}]
  %s2 = inlined_call_operand.hbm [shape: f32[4,1,128], index: 2, kind: input, shape index: {}]
  %s3 = inlined_call_operand.hbm [shape: bf16[256,128], index: 3, kind: output, shape index: {}]
  %s4 = sld [smem:[#allocation0]]
  $region34: #{tpu_custom_call.1} parent=0
    _
  %s6 = ssub.s32 1, %s4
  %s7 = scalar_select 0, %s6, %s4
  $region1: #{tpu_custom_call.1} parent=0
    #allocation2 [shape = 'u8[65536]{0}', space=vmem, size = 0x10000, scoped, tag = 'input window, operand 0, single buffered']
    #allocation3 [shape = 's32[1]{0}', space=sflag, size = 0x4, scoped, tag = 'scoped memory for tpu_custom_call.1']
    #allocation4 [shape = 's32[1]{0}', space=sflag, size = 0x4, scoped, tag = 'scoped memory for tpu_custom_call.1']
    #allocation5 [shape = 'u8[131072]{0}', space=vmem, size = 0x20000, scoped, tag = 'input window, operand 1, single buffered']
    #allocation6 [shape = 's32[1]{0}', space=sflag, size = 0x4, scoped, tag = 'scoped memory for tpu_custom_call.1']
    #allocation7 [shape = 'u8[2048]{0}', space=vmem, size = 0x800, scoped, tag = 'input window, operand 2, single buffered']
    #allocation8 [shape = 'u8[65536]{0}', space=vmem, size = 0x10000, scoped, tag = 'output window, operand 0, single buffered']
    %8 = vsyncpa [#allocation3], 0
    %9 = vsyncpa [#allocation6], 0
    %10 = vsyncpa [#allocation4], 0
    // Predicated region
    $region2: #{tpu_custom_call.1} parent=1 // pred_check
      _
    $region3: #{tpu_custom_call.1} parent=1 // pred_check_branch
      %12 = sbr.rel (0) target = $region5
    $region4: #{tpu_custom_call.1} parent=1 // pred_region
      %s14 = ssub.s32 2048, 2048
      %15 = vsyncadd [#allocation3], %s14
      %s16 = sshll.u32 [#allocation2], 4
      %s17 = int_to_ptr.vmem [resolvable:$true] %s16
      %22 = dma.hbm_to_vmem [thread:$0]  %s0, 2048, %s17, [#allocation3], 64, 64, 4
    $region5: #{tpu_custom_call.1} parent=1 // pred_fallthru
      _
    // Predicated region
    $region6: #{tpu_custom_call.1} parent=1 // pred_check
      _
    $region7: #{tpu_custom_call.1} parent=1 // pred_check_branch
      %24 = sbr.rel (0) target = $region9
    $region8: #{tpu_custom_call.1} parent=1 // pred_region
      %s26 = ssub.s32 4096, 4096
      %27 = vsyncadd [#allocation6], %s26
      %s28 = sshll.u32 [#allocation5], 4
      %s29 = int_to_ptr.vmem [resolvable:$true] %s28
      %34 = dma.hbm_to_vmem [thread:$0]  %s1, 4096, %s29, [#allocation6], 64, 64, 4
    $region9: #{tpu_custom_call.1} parent=1 // pred_fallthru
      _
    // Predicated region
    $region10: #{tpu_custom_call.1} parent=1 // pred_check
      _
    $region11: #{tpu_custom_call.1} parent=1 // pred_check_branch
      %36 = sbr.rel (0) target = $region13
    $region12: #{tpu_custom_call.1} parent=1 // pred_region
      %s38 = ssub.s32 64, 64
      %39 = vsyncadd [#allocation6], %s38
      %s40 = sshll.u32 [#allocation7], 4
      %s41 = int_to_ptr.vmem [resolvable:$true] %s40
      %46 = dma.hbm_to_vmem [thread:$0]  %s2, 64, %s41, [#allocation6], 16, 16, 1
    $region13: #{tpu_custom_call.1} parent=1 // pred_fallthru
      _
    // Predicated region
    $region14: #{tpu_custom_call.1} parent=1 // pred_check
      _
    $region15: #{tpu_custom_call.1} parent=1 // pred_check_branch
      %48 = sbr.rel (0) target = $region17
    $region16: #{tpu_custom_call.1} parent=1 // pred_region
      %49 = dma.done [#allocation3], 2048
    $region17: #{tpu_custom_call.1} parent=1 // pred_fallthru
      _
    // Predicated region
    $region18: #{tpu_custom_call.1} parent=1 // pred_check
      _
    $region19: #{tpu_custom_call.1} parent=1 // pred_check_branch
      %51 = sbr.rel (0) target = $region21
    $region20: #{tpu_custom_call.1} parent=1 // pred_region
      %52 = dma.done [#allocation6], 4096
    $region21: #{tpu_custom_call.1} parent=1 // pred_fallthru
      _
    // Predicated region
    $region22: #{tpu_custom_call.1} parent=1 // pred_check
      _
    $region23: #{tpu_custom_call.1} parent=1 // pred_check_branch
      %54 = sbr.rel (0) target = $region25
    $region24: #{tpu_custom_call.1} parent=1 // pred_region
      %55 = dma.done [#allocation6], 64
    $region25: #{tpu_custom_call.1} parent=1 // pred_fallthru
      _
    %v57 = vld [vmem:[#allocation2] sm:$0xf]
    %v58 = vld [vmem:[#allocation2 + $0x4] sm:$0xf]
    %v59 = vld [vmem:[#allocation2 + $0x8] sm:$0xf]
    %v60 = vld [vmem:[#allocation2 + $0xc] sm:$0xf]
    %v61 = vld [vmem:[#allocation2 + $0x10] sm:$0xf]
    %v62 = vld [vmem:[#allocation2 + $0x14] sm:$0xf]
    %v63 = vld [vmem:[#allocation2 + $0x18] sm:$0xf]
    %v64 = vld [vmem:[#allocation2 + $0x1c] sm:$0xf]
    %v65 = vld [vmem:[#allocation2 + $0x20] sm:$0xf]
    %v66 = vld [vmem:[#allocation2 + $0x24] sm:$0xf]
    %v67 = vld [vmem:[#allocation2 + $0x28] sm:$0xf]
    %v68 = vld [vmem:[#allocation2 + $0x2c] sm:$0xf]
    %v69 = vld [vmem:[#allocation2 + $0x30] sm:$0xf]
    %v70 = vld [vmem:[#allocation2 + $0x34] sm:$0xf]
    %v71 = vld [vmem:[#allocation2 + $0x38] sm:$0xf]
    %v72 = vld [vmem:[#allocation2 + $0x3c] sm:$0xf]
    %v73 = vld [vmem:[#allocation2 + $0x40] sm:$0xf]
    %v74 = vld [vmem:[#allocation2 + $0x44] sm:$0xf]
    %v75 = vld [vmem:[#allocation2 + $0x48] sm:$0xf]
    %v76 = vld [vmem:[#allocation2 + $0x4c] sm:$0xf]
    %v77 = vld [vmem:[#allocation2 + $0x50] sm:$0xf]
    %v78 = vld [vmem:[#allocation2 + $0x54] sm:$0xf]
    %v79 = vld [vmem:[#allocation2 + $0x58] sm:$0xf]
    %v80 = vld [vmem:[#allocation2 + $0x5c] sm:$0xf]
    %v81 = vld [vmem:[#allocation2 + $0x60] sm:$0xf]
    %v82 = vld [vmem:[#allocation2 + $0x64] sm:$0xf]
    %v83 = vld [vmem:[#allocation2 + $0x68] sm:$0xf]
    %v84 = vld [vmem:[#allocation2 + $0x6c] sm:$0xf]
    %v85 = vld [vmem:[#allocation2 + $0x70] sm:$0xf]
    %v86 = vld [vmem:[#allocation2 + $0x74] sm:$0xf]
    %v87 = vld [vmem:[#allocation2 + $0x78] sm:$0xf]
    %v88 = vld [vmem:[#allocation2 + $0x7c] sm:$0xf]
    %v89 = vld [vmem:[#allocation5] sm:$0xf]
    %v90 = vld [vmem:[#allocation5 + $0x4] sm:$0xf]
    %v91 = vld [vmem:[#allocation5 + $0x8] sm:$0xf]
    %v92 = vld [vmem:[#allocation5 + $0xc] sm:$0xf]
    %v93 = vld [vmem:[#allocation5 + $0x10] sm:$0xf]
    %v94 = vld [vmem:[#allocation5 + $0x14] sm:$0xf]
    %v95 = vld [vmem:[#allocation5 + $0x18] sm:$0xf]
    %v96 = vld [vmem:[#allocation5 + $0x1c] sm:$0xf]
    %v97 = vld [vmem:[#allocation5 + $0x20] sm:$0xf]
    %v98 = vld [vmem:[#allocation5 + $0x24] sm:$0xf]
    %v99 = vld [vmem:[#allocation5 + $0x28] sm:$0xf]
    %v100 = vld [vmem:[#allocation5 + $0x2c] sm:$0xf]
    %v101 = vld [vmem:[#allocation5 + $0x30] sm:$0xf]
    %v102 = vld [vmem:[#allocation5 + $0x34] sm:$0xf]
    %v103 = vld [vmem:[#allocation5 + $0x38] sm:$0xf]
    %v104 = vld [vmem:[#allocation5 + $0x3c] sm:$0xf]
    %v105 = vld [vmem:[#allocation7] sm:$0x1]
    %v107 = vlaneseq
    %v108 = vshrl.u32 %v107, 7
    %v109 = vsub.s32 0, %v108
    %v110 = vrot.slane %v105, %v109
    %v144 = vunpack.c.l.b16 %v57
    %v145 = vunpack.c.l.b16 %v58
    %v146 = vunpack.c.l.b16 %v59
    %v147 = vunpack.c.l.b16 %v60
    %v148 = vunpack.c.l.b16 %v61
    %v149 = vunpack.c.l.b16 %v62
    %v150 = vunpack.c.l.b16 %v63
    %v151 = vunpack.c.l.b16 %v64
    %v152 = vunpack.c.l.b16 %v65
    %v153 = vunpack.c.l.b16 %v66
    %v154 = vunpack.c.l.b16 %v67
    %v155 = vunpack.c.l.b16 %v68
    %v156 = vunpack.c.l.b16 %v69
    %v157 = vunpack.c.l.b16 %v70
    %v158 = vunpack.c.l.b16 %v71
    %v159 = vunpack.c.l.b16 %v72
    %v160 = vunpack.c.l.b16 %v73
    %v161 = vunpack.c.l.b16 %v74
    %v162 = vunpack.c.l.b16 %v75
    %v163 = vunpack.c.l.b16 %v76
    %v164 = vunpack.c.l.b16 %v77
    %v165 = vunpack.c.l.b16 %v78
    %v166 = vunpack.c.l.b16 %v79
    %v167 = vunpack.c.l.b16 %v80
    %v168 = vunpack.c.l.b16 %v81
    %v169 = vunpack.c.l.b16 %v82
    %v170 = vunpack.c.l.b16 %v83
    %v171 = vunpack.c.l.b16 %v84
    %v172 = vunpack.c.l.b16 %v85
    %v173 = vunpack.c.l.b16 %v86
    %v174 = vunpack.c.l.b16 %v87
    %v175 = vunpack.c.l.b16 %v88
    %v176 = vpack.c.b16 %v145, %v144
    %v177 = vpack.c.b16 %v147, %v146
    %v178 = vpack.c.b16 %v149, %v148
    %v179 = vpack.c.b16 %v151, %v150
    %v180 = vpack.c.b16 %v153, %v152
    %v181 = vpack.c.b16 %v155, %v154
    %v182 = vpack.c.b16 %v157, %v156
    %v183 = vpack.c.b16 %v159, %v158
    %v184 = vpack.c.b16 %v161, %v160
    %v185 = vpack.c.b16 %v163, %v162
    %v186 = vpack.c.b16 %v165, %v164
    %v187 = vpack.c.b16 %v167, %v166
    %v188 = vpack.c.b16 %v169, %v168
    %v189 = vpack.c.b16 %v171, %v170
    %v190 = vpack.c.b16 %v173, %v172
    %v191 = vpack.c.b16 %v175, %v174
    %v224 = vunpack.c.l.b16 %v89
    %v225 = vunpack.c.l.b16 %v90
    %v226 = vunpack.c.l.b16 %v91
    %v227 = vunpack.c.l.b16 %v92
    %v228 = vunpack.c.l.b16 %v93
    %v229 = vunpack.c.l.b16 %v94
    %v230 = vunpack.c.l.b16 %v95
    %v231 = vunpack.c.l.b16 %v96
    %v232 = vunpack.c.l.b16 %v97
    %v233 = vunpack.c.l.b16 %v98
    %v234 = vunpack.c.l.b16 %v99
    %v235 = vunpack.c.l.b16 %v100
    %v236 = vunpack.c.l.b16 %v101
    %v237 = vunpack.c.l.b16 %v102
    %v238 = vunpack.c.l.b16 %v103
    %v239 = vunpack.c.l.b16 %v104
    %v240 = vpack.c.b16 %v225, %v224
    %v241 = vpack.c.b16 %v227, %v226
    %v242 = vpack.c.b16 %v229, %v228
    %v243 = vpack.c.b16 %v231, %v230
    %v244 = vpack.c.b16 %v233, %v232
    %v245 = vpack.c.b16 %v235, %v234
    %v246 = vpack.c.b16 %v237, %v236
    %v247 = vpack.c.b16 %v239, %v238
    %256 = vmatprep.subr.bf16.mxu0 0
    %257 = vmatpush1.bf16.msra.mxu0 %v247
    %258 = vmatprep.subr.bf16.mxu0 0
    %259 = vmatpush1.bf16.msra.mxu0 %v246
    %260 = vmatprep.subr.bf16.mxu0 0
    %261 = vmatpush1.bf16.msra.mxu0 %v245
    %262 = vmatprep.subr.bf16.mxu0 0
    %263 = vmatpush1.bf16.msra.mxu0 %v244
    %264 = vmatprep.subr.bf16.mxu0 0
    %265 = vmatpush1.bf16.msra.mxu0 %v243
    %266 = vmatprep.subr.bf16.mxu0 0
    %267 = vmatpush1.bf16.msra.mxu0 %v242
    %268 = vmatprep.subr.bf16.mxu0 0
    %269 = vmatpush1.bf16.msra.mxu0 %v241
    %270 = vmatprep.subr.bf16.mxu0 0
    %271 = vmatpush1.bf16.msra.mxu0 %v240
    %272 = vmatprep.subr.bf16.mxu0 0
    %273 = vmatpush2.bf16.msra.mxu0 0
    %274 = vmatprep.subr.bf16.mxu0 0
    %275 = vmatpush2.bf16.msra.mxu0 0
    %276 = vmatprep.subr.bf16.mxu0 0
    %277 = vmatpush2.bf16.msra.mxu0 0
    %278 = vmatprep.subr.bf16.mxu0 0
    %279 = vmatpush2.bf16.msra.mxu0 0
    %280 = vmatprep.subr.bf16.mxu0 0
    %281 = vmatpush2.bf16.msra.mxu0 0
    %282 = vmatprep.subr.bf16.mxu0 0
    %283 = vmatpush2.bf16.msra.mxu0 0
    %284 = vmatprep.subr.bf16.mxu0 0
    %285 = vmatpush2.bf16.msra.mxu0 0
    %286 = vmatprep.subr.bf16.mxu0 0
    %287 = vmatpush2.bf16.msra.mxu0 0
    %288 = vmatprep.mubr.bf16.mxu0 0
    %289 = vmatmul.mubr.bf16.gmra.mxu0 %v176
    %v290 = vpop.f32.mrf.mxu0
    %v291 = vadd.f32 %v110, %v290
    %v292 = vpop.f32.mrf.mxu0
    %v293 = vpop.f32.mrf.mxu0
    %v294 = vadd.f32 %v110, %v293
    %v295 = vpop.f32.mrf.mxu0
    %296 = vmatprep.mubr.bf16.mxu0 0
    %297 = vmatmul.mubr.bf16.gmra.mxu0 %v177
    %v298 = vpop.f32.mrf.mxu0
    %v299 = vadd.f32 %v110, %v298
    %v300 = vpop.f32.mrf.mxu0
    %v301 = vpop.f32.mrf.mxu0
    %v302 = vadd.f32 %v110, %v301
    %v303 = vpop.f32.mrf.mxu0
    %304 = vmatprep.mubr.bf16.mxu0 0
    %305 = vmatmul.mubr.bf16.gmra.mxu0 %v178
    %v306 = vpop.f32.mrf.mxu0
    %v307 = vadd.f32 %v110, %v306
    %v308 = vpop.f32.mrf.mxu0
    %v309 = vpop.f32.mrf.mxu0
    %v310 = vadd.f32 %v110, %v309
    %v311 = vpop.f32.mrf.mxu0
    %312 = vmatprep.mubr.bf16.mxu0 0
    %313 = vmatmul.mubr.bf16.gmra.mxu0 %v179
    %v314 = vpop.f32.mrf.mxu0
    %v315 = vadd.f32 %v110, %v314
    %v316 = vpop.f32.mrf.mxu0
    %v317 = vpop.f32.mrf.mxu0
    %v318 = vadd.f32 %v110, %v317
    %v319 = vpop.f32.mrf.mxu0
    %320 = vmatprep.mubr.bf16.mxu0 0
    %321 = vmatmul.mubr.bf16.gmra.mxu0 %v180
    %v322 = vpop.f32.mrf.mxu0
    %v323 = vadd.f32 %v110, %v322
    %v324 = vpop.f32.mrf.mxu0
    %v325 = vpop.f32.mrf.mxu0
    %v326 = vadd.f32 %v110, %v325
    %v327 = vpop.f32.mrf.mxu0
    %328 = vmatprep.mubr.bf16.mxu0 0
    %329 = vmatmul.mubr.bf16.gmra.mxu0 %v181
    %v330 = vpop.f32.mrf.mxu0
    %v331 = vadd.f32 %v110, %v330
    %v332 = vpop.f32.mrf.mxu0
    %v333 = vpop.f32.mrf.mxu0
    %v334 = vadd.f32 %v110, %v333
    %v335 = vpop.f32.mrf.mxu0
    %336 = vmatprep.mubr.bf16.mxu0 0
    %337 = vmatmul.mubr.bf16.gmra.mxu0 %v182
    %v338 = vpop.f32.mrf.mxu0
    %v339 = vadd.f32 %v110, %v338
    %v340 = vpop.f32.mrf.mxu0
    %v341 = vpop.f32.mrf.mxu0
    %v342 = vadd.f32 %v110, %v341
    %v343 = vpop.f32.mrf.mxu0
    %344 = vmatprep.mubr.bf16.mxu0 0
    %345 = vmatmul.mubr.bf16.gmra.mxu0 %v183
    %v346 = vpop.f32.mrf.mxu0
    %v347 = vadd.f32 %v110, %v346
    %v348 = vpop.f32.mrf.mxu0
    %v349 = vpop.f32.mrf.mxu0
    %v350 = vadd.f32 %v110, %v349
    %v351 = vpop.f32.mrf.mxu0
    %352 = vmatprep.mubr.bf16.mxu0 0
    %353 = vmatmul.mubr.bf16.gmra.mxu0 %v184
    %v354 = vpop.f32.mrf.mxu0
    %v355 = vadd.f32 %v110, %v354
    %v356 = vpop.f32.mrf.mxu0
    %v357 = vpop.f32.mrf.mxu0
    %v358 = vadd.f32 %v110, %v357
    %v359 = vpop.f32.mrf.mxu0
    %360 = vmatprep.mubr.bf16.mxu0 0
    %361 = vmatmul.mubr.bf16.gmra.mxu0 %v185
    %v362 = vpop.f32.mrf.mxu0
    %v363 = vadd.f32 %v110, %v362
    %v364 = vpop.f32.mrf.mxu0
    %v365 = vpop.f32.mrf.mxu0
    %v366 = vadd.f32 %v110, %v365
    %v367 = vpop.f32.mrf.mxu0
    %368 = vmatprep.mubr.bf16.mxu0 0
    %369 = vmatmul.mubr.bf16.gmra.mxu0 %v186
    %v370 = vpop.f32.mrf.mxu0
    %v371 = vadd.f32 %v110, %v370
    %v372 = vpop.f32.mrf.mxu0
    %v373 = vpop.f32.mrf.mxu0
    %v374 = vadd.f32 %v110, %v373
    %v375 = vpop.f32.mrf.mxu0
    %376 = vmatprep.mubr.bf16.mxu0 0
    %377 = vmatmul.mubr.bf16.gmra.mxu0 %v187
    %v378 = vpop.f32.mrf.mxu0
    %v379 = vadd.f32 %v110, %v378
    %v380 = vpop.f32.mrf.mxu0
    %v381 = vpop.f32.mrf.mxu0
    %v382 = vadd.f32 %v110, %v381
    %v383 = vpop.f32.mrf.mxu0
    %384 = vmatprep.mubr.bf16.mxu0 0
    %385 = vmatmul.mubr.bf16.gmra.mxu0 %v188
    %v386 = vpop.f32.mrf.mxu0
    %v387 = vadd.f32 %v110, %v386
    %v388 = vpop.f32.mrf.mxu0
    %v389 = vpop.f32.mrf.mxu0
    %v390 = vadd.f32 %v110, %v389
    %v391 = vpop.f32.mrf.mxu0
    %392 = vmatprep.mubr.bf16.mxu0 0
    %393 = vmatmul.mubr.bf16.gmra.mxu0 %v189
    %v394 = vpop.f32.mrf.mxu0
    %v395 = vadd.f32 %v110, %v394
    %v396 = vpop.f32.mrf.mxu0
    %v397 = vpop.f32.mrf.mxu0
    %v398 = vadd.f32 %v110, %v397
    %v399 = vpop.f32.mrf.mxu0
    %400 = vmatprep.mubr.bf16.mxu0 0
    %401 = vmatmul.mubr.bf16.gmra.mxu0 %v190
    %v402 = vpop.f32.mrf.mxu0
    %v403 = vadd.f32 %v110, %v402
    %v404 = vpop.f32.mrf.mxu0
    %v405 = vpop.f32.mrf.mxu0
    %v406 = vadd.f32 %v110, %v405
    %v407 = vpop.f32.mrf.mxu0
    %408 = vmatprep.mubr.bf16.mxu0 0
    %409 = vmatmul.mubr.bf16.gmra.mxu0 %v191
    %v410 = vpop.f32.mrf.mxu0
    %v411 = vadd.f32 %v110, %v410
    %v412 = vpop.f32.mrf.mxu0
    %v413 = vpop.f32.mrf.mxu0
    %v414 = vadd.f32 %v110, %v413
    %v415 = vpop.f32.mrf.mxu0
    %416 = vdwg.mxu0
    %v417 = vmax.f32 %v291, 0.0
    %v418 = vmax.f32 %v294, 0.0
    %v419 = vmax.f32 %v299, 0.0
    %v420 = vmax.f32 %v302, 0.0
    %v421 = vmax.f32 %v307, 0.0
    %v422 = vmax.f32 %v310, 0.0
    %v423 = vmax.f32 %v315, 0.0
    %v424 = vmax.f32 %v318, 0.0
    %v425 = vmax.f32 %v323, 0.0
    %v426 = vmax.f32 %v326, 0.0
    %v427 = vmax.f32 %v331, 0.0
    %v428 = vmax.f32 %v334, 0.0
    %v429 = vmax.f32 %v339, 0.0
    %v430 = vmax.f32 %v342, 0.0
    %v431 = vmax.f32 %v347, 0.0
    %v432 = vmax.f32 %v350, 0.0
    %v433 = vmax.f32 %v355, 0.0
    %v434 = vmax.f32 %v358, 0.0
    %v435 = vmax.f32 %v363, 0.0
    %v436 = vmax.f32 %v366, 0.0
    %v437 = vmax.f32 %v371, 0.0
    %v438 = vmax.f32 %v374, 0.0
    %v439 = vmax.f32 %v379, 0.0
    %v440 = vmax.f32 %v382, 0.0
    %v441 = vmax.f32 %v387, 0.0
    %v442 = vmax.f32 %v390, 0.0
    %v443 = vmax.f32 %v395, 0.0
    %v444 = vmax.f32 %v398, 0.0
    %v445 = vmax.f32 %v403, 0.0
    %v446 = vmax.f32 %v406, 0.0
    %v447 = vmax.f32 %v411, 0.0
    %v448 = vmax.f32 %v414, 0.0
    %v449 = vpack.c.bf16 %v418, %v417
    %v450 = vpack.c.bf16 %v420, %v419
    %v451 = vpack.c.bf16 %v422, %v421
    %v452 = vpack.c.bf16 %v424, %v423
    %v453 = vpack.c.bf16 %v426, %v425
    %v454 = vpack.c.bf16 %v428, %v427
    %v455 = vpack.c.bf16 %v430, %v429
    %v456 = vpack.c.bf16 %v432, %v431
    %v457 = vpack.c.bf16 %v434, %v433
    %v458 = vpack.c.bf16 %v436, %v435
    %v459 = vpack.c.bf16 %v438, %v437
    %v460 = vpack.c.bf16 %v440, %v439
    %v461 = vpack.c.bf16 %v442, %v441
    %v462 = vpack.c.bf16 %v444, %v443
    %v463 = vpack.c.bf16 %v446, %v445
    %v464 = vpack.c.bf16 %v448, %v447
    %s465 = scalar_lea.vmem [#allocation5], 64
    %v466 = vld [vmem:[%s465] sm:$0xf]
    %v467 = vld [vmem:[%s465 + $0x4] sm:$0xf]
    %v468 = vld [vmem:[%s465 + $0x8] sm:$0xf]
    %v469 = vld [vmem:[%s465 + $0xc] sm:$0xf]
    %v470 = vld [vmem:[%s465 + $0x10] sm:$0xf]
    %v471 = vld [vmem:[%s465 + $0x14] sm:$0xf]
    %v472 = vld [vmem:[%s465 + $0x18] sm:$0xf]
    %v473 = vld [vmem:[%s465 + $0x1c] sm:$0xf]
    %v474 = vld [vmem:[%s465 + $0x20] sm:$0xf]
    %v475 = vld [vmem:[%s465 + $0x24] sm:$0xf]
    %v476 = vld [vmem:[%s465 + $0x28] sm:$0xf]
    %v477 = vld [vmem:[%s465 + $0x2c] sm:$0xf]
    %v478 = vld [vmem:[%s465 + $0x30] sm:$0xf]
    %v479 = vld [vmem:[%s465 + $0x34] sm:$0xf]
    %v480 = vld [vmem:[%s465 + $0x38] sm:$0xf]
    %v481 = vld [vmem:[%s465 + $0x3c] sm:$0xf]
    %s482 = scalar_lea.vmem [#allocation7], 1
    %v483 = vld [vmem:[%s482] sm:$0x1]
    %v485 = vlaneseq
    %v486 = vshrl.u32 %v485, 7
    %v487 = vsub.s32 0, %v486
    %v488 = vrot.slane %v483, %v487
    %v506 = vunpack.c.l.b16 %v466
    %v507 = vunpack.c.l.b16 %v467
    %v508 = vunpack.c.l.b16 %v468
    %v509 = vunpack.c.l.b16 %v469
    %v510 = vunpack.c.l.b16 %v470
    %v511 = vunpack.c.l.b16 %v471
    %v512 = vunpack.c.l.b16 %v472
    %v513 = vunpack.c.l.b16 %v473
    %v514 = vunpack.c.l.b16 %v474
    %v515 = vunpack.c.l.b16 %v475
    %v516 = vunpack.c.l.b16 %v476
    %v517 = vunpack.c.l.b16 %v477
    %v518 = vunpack.c.l.b16 %v478
    %v519 = vunpack.c.l.b16 %v479
    %v520 = vunpack.c.l.b16 %v480
    %v521 = vunpack.c.l.b16 %v481
    %v522 = vpack.c.b16 %v507, %v506
    %v523 = vpack.c.b16 %v509, %v508
    %v524 = vpack.c.b16 %v511, %v510
    %v525 = vpack.c.b16 %v513, %v512
    %v526 = vpack.c.b16 %v515, %v514
    %v527 = vpack.c.b16 %v517, %v516
    %v528 = vpack.c.b16 %v519, %v518
    %v529 = vpack.c.b16 %v521, %v520
    %538 = vmatprep.subr.bf16.mxu0 0
    %539 = vmatpush1.bf16.msra.mxu0 %v529
    %540 = vmatprep.subr.bf16.mxu0 0
    %541 = vmatpush1.bf16.msra.mxu0 %v528
    %542 = vmatprep.subr.bf16.mxu0 0
    %543 = vmatpush1.bf16.msra.mxu0 %v527
    %544 = vmatprep.subr.bf16.mxu0 0
    %545 = vmatpush1.bf16.msra.mxu0 %v526
    %546 = vmatprep.subr.bf16.mxu0 0
    %547 = vmatpush1.bf16.msra.mxu0 %v525
    %548 = vmatprep.subr.bf16.mxu0 0
    %549 = vmatpush1.bf16.msra.mxu0 %v524
    %550 = vmatprep.subr.bf16.mxu0 0
    %551 = vmatpush1.bf16.msra.mxu0 %v523
    %552 = vmatprep.subr.bf16.mxu0 0
    %553 = vmatpush1.bf16.msra.mxu0 %v522
    %554 = vmatprep.subr.bf16.mxu0 0
    %555 = vmatpush2.bf16.msra.mxu0 0
    %556 = vmatprep.subr.bf16.mxu0 0
    %557 = vmatpush2.bf16.msra.mxu0 0
    %558 = vmatprep.subr.bf16.mxu0 0
    %559 = vmatpush2.bf16.msra.mxu0 0
    %560 = vmatprep.subr.bf16.mxu0 0
    %561 = vmatpush2.bf16.msra.mxu0 0
    %562 = vmatprep.subr.bf16.mxu0 0
    %563 = vmatpush2.bf16.msra.mxu0 0
    %564 = vmatprep.subr.bf16.mxu0 0
    %565 = vmatpush2.bf16.msra.mxu0 0
    %566 = vmatprep.subr.bf16.mxu0 0
    %567 = vmatpush2.bf16.msra.mxu0 0
    %568 = vmatprep.subr.bf16.mxu0 0
    %569 = vmatpush2.bf16.msra.mxu0 0
    %570 = vmatprep.mubr.bf16.mxu0 0
    %571 = vmatmul.mubr.bf16.gmra.mxu0 %v449
    %v572 = vpop.f32.mrf.mxu0
    %v573 = vadd.f32 %v488, %v572
    %v574 = vpop.f32.mrf.mxu0
    %v575 = vpop.f32.mrf.mxu0
    %v576 = vadd.f32 %v488, %v575
    %v577 = vpop.f32.mrf.mxu0
    %578 = vmatprep.mubr.bf16.mxu0 0
    %579 = vmatmul.mubr.bf16.gmra.mxu0 %v450
    %v580 = vpop.f32.mrf.mxu0
    %v581 = vadd.f32 %v488, %v580
    %v582 = vpop.f32.mrf.mxu0
    %v583 = vpop.f32.mrf.mxu0
    %v584 = vadd.f32 %v488, %v583
    %v585 = vpop.f32.mrf.mxu0
    %586 = vmatprep.mubr.bf16.mxu0 0
    %587 = vmatmul.mubr.bf16.gmra.mxu0 %v451
    %v588 = vpop.f32.mrf.mxu0
    %v589 = vadd.f32 %v488, %v588
    %v590 = vpop.f32.mrf.mxu0
    %v591 = vpop.f32.mrf.mxu0
    %v592 = vadd.f32 %v488, %v591
    %v593 = vpop.f32.mrf.mxu0
    %594 = vmatprep.mubr.bf16.mxu0 0
    %595 = vmatmul.mubr.bf16.gmra.mxu0 %v452
    %v596 = vpop.f32.mrf.mxu0
    %v597 = vadd.f32 %v488, %v596
    %v598 = vpop.f32.mrf.mxu0
    %v599 = vpop.f32.mrf.mxu0
    %v600 = vadd.f32 %v488, %v599
    %v601 = vpop.f32.mrf.mxu0
    %602 = vmatprep.mubr.bf16.mxu0 0
    %603 = vmatmul.mubr.bf16.gmra.mxu0 %v453
    %v604 = vpop.f32.mrf.mxu0
    %v605 = vadd.f32 %v488, %v604
    %v606 = vpop.f32.mrf.mxu0
    %v607 = vpop.f32.mrf.mxu0
    %v608 = vadd.f32 %v488, %v607
    %v609 = vpop.f32.mrf.mxu0
    %610 = vmatprep.mubr.bf16.mxu0 0
    %611 = vmatmul.mubr.bf16.gmra.mxu0 %v454
    %v612 = vpop.f32.mrf.mxu0
    %v613 = vadd.f32 %v488, %v612
    %v614 = vpop.f32.mrf.mxu0
    %v615 = vpop.f32.mrf.mxu0
    %v616 = vadd.f32 %v488, %v615
    %v617 = vpop.f32.mrf.mxu0
    %618 = vmatprep.mubr.bf16.mxu0 0
    %619 = vmatmul.mubr.bf16.gmra.mxu0 %v455
    %v620 = vpop.f32.mrf.mxu0
    %v621 = vadd.f32 %v488, %v620
    %v622 = vpop.f32.mrf.mxu0
    %v623 = vpop.f32.mrf.mxu0
    %v624 = vadd.f32 %v488, %v623
    %v625 = vpop.f32.mrf.mxu0
    %626 = vmatprep.mubr.bf16.mxu0 0
    %627 = vmatmul.mubr.bf16.gmra.mxu0 %v456
    %v628 = vpop.f32.mrf.mxu0
    %v629 = vadd.f32 %v488, %v628
    %v630 = vpop.f32.mrf.mxu0
    %v631 = vpop.f32.mrf.mxu0
    %v632 = vadd.f32 %v488, %v631
    %v633 = vpop.f32.mrf.mxu0
    %634 = vmatprep.mubr.bf16.mxu0 0
    %635 = vmatmul.mubr.bf16.gmra.mxu0 %v457
    %v636 = vpop.f32.mrf.mxu0
    %v637 = vadd.f32 %v488, %v636
    %v638 = vpop.f32.mrf.mxu0
    %v639 = vpop.f32.mrf.mxu0
    %v640 = vadd.f32 %v488, %v639
    %v641 = vpop.f32.mrf.mxu0
    %642 = vmatprep.mubr.bf16.mxu0 0
    %643 = vmatmul.mubr.bf16.gmra.mxu0 %v458
    %v644 = vpop.f32.mrf.mxu0
    %v645 = vadd.f32 %v488, %v644
    %v646 = vpop.f32.mrf.mxu0
    %v647 = vpop.f32.mrf.mxu0
    %v648 = vadd.f32 %v488, %v647
    %v649 = vpop.f32.mrf.mxu0
    %650 = vmatprep.mubr.bf16.mxu0 0
    %651 = vmatmul.mubr.bf16.gmra.mxu0 %v459
    %v652 = vpop.f32.mrf.mxu0
    %v653 = vadd.f32 %v488, %v652
    %v654 = vpop.f32.mrf.mxu0
    %v655 = vpop.f32.mrf.mxu0
    %v656 = vadd.f32 %v488, %v655
    %v657 = vpop.f32.mrf.mxu0
    %658 = vmatprep.mubr.bf16.mxu0 0
    %659 = vmatmul.mubr.bf16.gmra.mxu0 %v460
    %v660 = vpop.f32.mrf.mxu0
    %v661 = vadd.f32 %v488, %v660
    %v662 = vpop.f32.mrf.mxu0
    %v663 = vpop.f32.mrf.mxu0
    %v664 = vadd.f32 %v488, %v663
    %v665 = vpop.f32.mrf.mxu0
    %666 = vmatprep.mubr.bf16.mxu0 0
    %667 = vmatmul.mubr.bf16.gmra.mxu0 %v461
    %v668 = vpop.f32.mrf.mxu0
    %v669 = vadd.f32 %v488, %v668
    %v670 = vpop.f32.mrf.mxu0
    %v671 = vpop.f32.mrf.mxu0
    %v672 = vadd.f32 %v488, %v671
    %v673 = vpop.f32.mrf.mxu0
    %674 = vmatprep.mubr.bf16.mxu0 0
    %675 = vmatmul.mubr.bf16.gmra.mxu0 %v462
    %v676 = vpop.f32.mrf.mxu0
    %v677 = vadd.f32 %v488, %v676
    %v678 = vpop.f32.mrf.mxu0
    %v679 = vpop.f32.mrf.mxu0
    %v680 = vadd.f32 %v488, %v679
    %v681 = vpop.f32.mrf.mxu0
    %682 = vmatprep.mubr.bf16.mxu0 0
    %683 = vmatmul.mubr.bf16.gmra.mxu0 %v463
    %v684 = vpop.f32.mrf.mxu0
    %v685 = vadd.f32 %v488, %v684
    %v686 = vpop.f32.mrf.mxu0
    %v687 = vpop.f32.mrf.mxu0
    %v688 = vadd.f32 %v488, %v687
    %v689 = vpop.f32.mrf.mxu0
    %690 = vmatprep.mubr.bf16.mxu0 0
    %691 = vmatmul.mubr.bf16.gmra.mxu0 %v464
    %v692 = vpop.f32.mrf.mxu0
    %v693 = vadd.f32 %v488, %v692
    %v694 = vpop.f32.mrf.mxu0
    %v695 = vpop.f32.mrf.mxu0
    %v696 = vadd.f32 %v488, %v695
    %v697 = vpop.f32.mrf.mxu0
    %698 = vdwg.mxu0
    %v699 = vmax.f32 %v573, 0.0
    %v700 = vmax.f32 %v576, 0.0
    %v701 = vmax.f32 %v581, 0.0
    %v702 = vmax.f32 %v584, 0.0
    %v703 = vmax.f32 %v589, 0.0
    %v704 = vmax.f32 %v592, 0.0
    %v705 = vmax.f32 %v597, 0.0
    %v706 = vmax.f32 %v600, 0.0
    %v707 = vmax.f32 %v605, 0.0
    %v708 = vmax.f32 %v608, 0.0
    %v709 = vmax.f32 %v613, 0.0
    %v710 = vmax.f32 %v616, 0.0
    %v711 = vmax.f32 %v621, 0.0
    %v712 = vmax.f32 %v624, 0.0
    %v713 = vmax.f32 %v629, 0.0
    %v714 = vmax.f32 %v632, 0.0
    %v715 = vmax.f32 %v637, 0.0
    %v716 = vmax.f32 %v640, 0.0
    %v717 = vmax.f32 %v645, 0.0
    %v718 = vmax.f32 %v648, 0.0
    %v719 = vmax.f32 %v653, 0.0
    %v720 = vmax.f32 %v656, 0.0
    %v721 = vmax.f32 %v661, 0.0
    %v722 = vmax.f32 %v664, 0.0
    %v723 = vmax.f32 %v669, 0.0
    %v724 = vmax.f32 %v672, 0.0
    %v725 = vmax.f32 %v677, 0.0
    %v726 = vmax.f32 %v680, 0.0
    %v727 = vmax.f32 %v685, 0.0
    %v728 = vmax.f32 %v688, 0.0
    %v729 = vmax.f32 %v693, 0.0
    %v730 = vmax.f32 %v696, 0.0
    %v731 = vpack.c.bf16 %v700, %v699
    %v732 = vpack.c.bf16 %v702, %v701
    %v733 = vpack.c.bf16 %v704, %v703
    %v734 = vpack.c.bf16 %v706, %v705
    %v735 = vpack.c.bf16 %v708, %v707
    %v736 = vpack.c.bf16 %v710, %v709
    %v737 = vpack.c.bf16 %v712, %v711
    %v738 = vpack.c.bf16 %v714, %v713
    %v739 = vpack.c.bf16 %v716, %v715
    %v740 = vpack.c.bf16 %v718, %v717
    %v741 = vpack.c.bf16 %v720, %v719
    %v742 = vpack.c.bf16 %v722, %v721
    %v743 = vpack.c.bf16 %v724, %v723
    %v744 = vpack.c.bf16 %v726, %v725
    %v745 = vpack.c.bf16 %v728, %v727
    %v746 = vpack.c.bf16 %v730, %v729
    %s747 = scalar_lea.vmem [#allocation5], 128
    %v748 = vld [vmem:[%s747] sm:$0xf]
    %v749 = vld [vmem:[%s747 + $0x4] sm:$0xf]
    %v750 = vld [vmem:[%s747 + $0x8] sm:$0xf]
    %v751 = vld [vmem:[%s747 + $0xc] sm:$0xf]
    %v752 = vld [vmem:[%s747 + $0x10] sm:$0xf]
    %v753 = vld [vmem:[%s747 + $0x14] sm:$0xf]
    %v754 = vld [vmem:[%s747 + $0x18] sm:$0xf]
    %v755 = vld [vmem:[%s747 + $0x1c] sm:$0xf]
    %v756 = vld [vmem:[%s747 + $0x20] sm:$0xf]
    %v757 = vld [vmem:[%s747 + $0x24] sm:$0xf]
    %v758 = vld [vmem:[%s747 + $0x28] sm:$0xf]
    %v759 = vld [vmem:[%s747 + $0x2c] sm:$0xf]
    %v760 = vld [vmem:[%s747 + $0x30] sm:$0xf]
    %v761 = vld [vmem:[%s747 + $0x34] sm:$0xf]
    %v762 = vld [vmem:[%s747 + $0x38] sm:$0xf]
    %v763 = vld [vmem:[%s747 + $0x3c] sm:$0xf]
    %s764 = scalar_lea.vmem [#allocation7], 2
    %v765 = vld [vmem:[%s764] sm:$0x1]
    %v767 = vlaneseq
    %v768 = vshrl.u32 %v767, 7
    %v769 = vsub.s32 0, %v768
    %v770 = vrot.slane %v765, %v769
    %v788 = vunpack.c.l.b16 %v748
    %v789 = vunpack.c.l.b16 %v749
    %v790 = vunpack.c.l.b16 %v750
    %v791 = vunpack.c.l.b16 %v751
    %v792 = vunpack.c.l.b16 %v752
    %v793 = vunpack.c.l.b16 %v753
    %v794 = vunpack.c.l.b16 %v754
    %v795 = vunpack.c.l.b16 %v755
    %v796 = vunpack.c.l.b16 %v756
    %v797 = vunpack.c.l.b16 %v757
    %v798 = vunpack.c.l.b16 %v758
    %v799 = vunpack.c.l.b16 %v759
    %v800 = vunpack.c.l.b16 %v760
    %v801 = vunpack.c.l.b16 %v761
    %v802 = vunpack.c.l.b16 %v762
    %v803 = vunpack.c.l.b16 %v763
    %v804 = vpack.c.b16 %v789, %v788
    %v805 = vpack.c.b16 %v791, %v790
    %v806 = vpack.c.b16 %v793, %v792
    %v807 = vpack.c.b16 %v795, %v794
    %v808 = vpack.c.b16 %v797, %v796
    %v809 = vpack.c.b16 %v799, %v798
    %v810 = vpack.c.b16 %v801, %v800
    %v811 = vpack.c.b16 %v803, %v802
    %820 = vmatprep.subr.bf16.mxu0 0
    %821 = vmatpush1.bf16.msra.mxu0 %v811
    %822 = vmatprep.subr.bf16.mxu0 0
    %823 = vmatpush1.bf16.msra.mxu0 %v810
    %824 = vmatprep.subr.bf16.mxu0 0
    %825 = vmatpush1.bf16.msra.mxu0 %v809
    %826 = vmatprep.subr.bf16.mxu0 0
    %827 = vmatpush1.bf16.msra.mxu0 %v808
    %828 = vmatprep.subr.bf16.mxu0 0
    %829 = vmatpush1.bf16.msra.mxu0 %v807
    %830 = vmatprep.subr.bf16.mxu0 0
    %831 = vmatpush1.bf16.msra.mxu0 %v806
    %832 = vmatprep.subr.bf16.mxu0 0
    %833 = vmatpush1.bf16.msra.mxu0 %v805
    %834 = vmatprep.subr.bf16.mxu0 0
    %835 = vmatpush1.bf16.msra.mxu0 %v804
    %836 = vmatprep.subr.bf16.mxu0 0
    %837 = vmatpush2.bf16.msra.mxu0 0
    %838 = vmatprep.subr.bf16.mxu0 0
    %839 = vmatpush2.bf16.msra.mxu0 0
    %840 = vmatprep.subr.bf16.mxu0 0
    %841 = vmatpush2.bf16.msra.mxu0 0
    %842 = vmatprep.subr.bf16.mxu0 0
    %843 = vmatpush2.bf16.msra.mxu0 0
    %844 = vmatprep.subr.bf16.mxu0 0
    %845 = vmatpush2.bf16.msra.mxu0 0
    %846 = vmatprep.subr.bf16.mxu0 0
    %847 = vmatpush2.bf16.msra.mxu0 0
    %848 = vmatprep.subr.bf16.mxu0 0
    %849 = vmatpush2.bf16.msra.mxu0 0
    %850 = vmatprep.subr.bf16.mxu0 0
    %851 = vmatpush2.bf16.msra.mxu0 0
    %852 = vmatprep.mubr.bf16.mxu0 0
    %853 = vmatmul.mubr.bf16.gmra.mxu0 %v731
    %v854 = vpop.f32.mrf.mxu0
    %v855 = vadd.f32 %v770, %v854
    %v856 = vpop.f32.mrf.mxu0
    %v857 = vpop.f32.mrf.mxu0
    %v858 = vadd.f32 %v770, %v857
    %v859 = vpop.f32.mrf.mxu0
    %860 = vmatprep.mubr.bf16.mxu0 0
    %861 = vmatmul.mubr.bf16.gmra.mxu0 %v732
    %v862 = vpop.f32.mrf.mxu0
    %v863 = vadd.f32 %v770, %v862
    %v864 = vpop.f32.mrf.mxu0
    %v865 = vpop.f32.mrf.mxu0
    %v866 = vadd.f32 %v770, %v865
    %v867 = vpop.f32.mrf.mxu0
    %868 = vmatprep.mubr.bf16.mxu0 0
    %869 = vmatmul.mubr.bf16.gmra.mxu0 %v733
    %v870 = vpop.f32.mrf.mxu0
    %v871 = vadd.f32 %v770, %v870
    %v872 = vpop.f32.mrf.mxu0
    %v873 = vpop.f32.mrf.mxu0
    %v874 = vadd.f32 %v770, %v873
    %v875 = vpop.f32.mrf.mxu0
    %876 = vmatprep.mubr.bf16.mxu0 0
    %877 = vmatmul.mubr.bf16.gmra.mxu0 %v734
    %v878 = vpop.f32.mrf.mxu0
    %v879 = vadd.f32 %v770, %v878
    %v880 = vpop.f32.mrf.mxu0
    %v881 = vpop.f32.mrf.mxu0
    %v882 = vadd.f32 %v770, %v881
    %v883 = vpop.f32.mrf.mxu0
    %884 = vmatprep.mubr.bf16.mxu0 0
    %885 = vmatmul.mubr.bf16.gmra.mxu0 %v735
    %v886 = vpop.f32.mrf.mxu0
    %v887 = vadd.f32 %v770, %v886
    %v888 = vpop.f32.mrf.mxu0
    %v889 = vpop.f32.mrf.mxu0
    %v890 = vadd.f32 %v770, %v889
    %v891 = vpop.f32.mrf.mxu0
    %892 = vmatprep.mubr.bf16.mxu0 0
    %893 = vmatmul.mubr.bf16.gmra.mxu0 %v736
    %v894 = vpop.f32.mrf.mxu0
    %v895 = vadd.f32 %v770, %v894
    %v896 = vpop.f32.mrf.mxu0
    %v897 = vpop.f32.mrf.mxu0
    %v898 = vadd.f32 %v770, %v897
    %v899 = vpop.f32.mrf.mxu0
    %900 = vmatprep.mubr.bf16.mxu0 0
    %901 = vmatmul.mubr.bf16.gmra.mxu0 %v737
    %v902 = vpop.f32.mrf.mxu0
    %v903 = vadd.f32 %v770, %v902
    %v904 = vpop.f32.mrf.mxu0
    %v905 = vpop.f32.mrf.mxu0
    %v906 = vadd.f32 %v770, %v905
    %v907 = vpop.f32.mrf.mxu0
    %908 = vmatprep.mubr.bf16.mxu0 0
    %909 = vmatmul.mubr.bf16.gmra.mxu0 %v738
    %v910 = vpop.f32.mrf.mxu0
    %v911 = vadd.f32 %v770, %v910
    %v912 = vpop.f32.mrf.mxu0
    %v913 = vpop.f32.mrf.mxu0
    %v914 = vadd.f32 %v770, %v913
    %v915 = vpop.f32.mrf.mxu0
    %916 = vmatprep.mubr.bf16.mxu0 0
    %917 = vmatmul.mubr.bf16.gmra.mxu0 %v739
    %v918 = vpop.f32.mrf.mxu0
    %v919 = vadd.f32 %v770, %v918
    %v920 = vpop.f32.mrf.mxu0
    %v921 = vpop.f32.mrf.mxu0
    %v922 = vadd.f32 %v770, %v921
    %v923 = vpop.f32.mrf.mxu0
    %924 = vmatprep.mubr.bf16.mxu0 0
    %925 = vmatmul.mubr.bf16.gmra.mxu0 %v740
    %v926 = vpop.f32.mrf.mxu0
    %v927 = vadd.f32 %v770, %v926
    %v928 = vpop.f32.mrf.mxu0
    %v929 = vpop.f32.mrf.mxu0
    %v930 = vadd.f32 %v770, %v929
    %v931 = vpop.f32.mrf.mxu0
    %932 = vmatprep.mubr.bf16.mxu0 0
    %933 = vmatmul.mubr.bf16.gmra.mxu0 %v741
    %v934 = vpop.f32.mrf.mxu0
    %v935 = vadd.f32 %v770, %v934
    %v936 = vpop.f32.mrf.mxu0
    %v937 = vpop.f32.mrf.mxu0
    %v938 = vadd.f32 %v770, %v937
    %v939 = vpop.f32.mrf.mxu0
    %940 = vmatprep.mubr.bf16.mxu0 0
    %941 = vmatmul.mubr.bf16.gmra.mxu0 %v742
    %v942 = vpop.f32.mrf.mxu0
    %v943 = vadd.f32 %v770, %v942
    %v944 = vpop.f32.mrf.mxu0
    %v945 = vpop.f32.mrf.mxu0
    %v946 = vadd.f32 %v770, %v945
    %v947 = vpop.f32.mrf.mxu0
    %948 = vmatprep.mubr.bf16.mxu0 0
    %949 = vmatmul.mubr.bf16.gmra.mxu0 %v743
    %v950 = vpop.f32.mrf.mxu0
    %v951 = vadd.f32 %v770, %v950
    %v952 = vpop.f32.mrf.mxu0
    %v953 = vpop.f32.mrf.mxu0
    %v954 = vadd.f32 %v770, %v953
    %v955 = vpop.f32.mrf.mxu0
    %956 = vmatprep.mubr.bf16.mxu0 0
    %957 = vmatmul.mubr.bf16.gmra.mxu0 %v744
    %v958 = vpop.f32.mrf.mxu0
    %v959 = vadd.f32 %v770, %v958
    %v960 = vpop.f32.mrf.mxu0
    %v961 = vpop.f32.mrf.mxu0
    %v962 = vadd.f32 %v770, %v961
    %v963 = vpop.f32.mrf.mxu0
    %964 = vmatprep.mubr.bf16.mxu0 0
    %965 = vmatmul.mubr.bf16.gmra.mxu0 %v745
    %v966 = vpop.f32.mrf.mxu0
    %v967 = vadd.f32 %v770, %v966
    %v968 = vpop.f32.mrf.mxu0
    %v969 = vpop.f32.mrf.mxu0
    %v970 = vadd.f32 %v770, %v969
    %v971 = vpop.f32.mrf.mxu0
    %972 = vmatprep.mubr.bf16.mxu0 0
    %973 = vmatmul.mubr.bf16.gmra.mxu0 %v746
    %v974 = vpop.f32.mrf.mxu0
    %v975 = vadd.f32 %v770, %v974
    %v976 = vpop.f32.mrf.mxu0
    %v977 = vpop.f32.mrf.mxu0
    %v978 = vadd.f32 %v770, %v977
    %v979 = vpop.f32.mrf.mxu0
    %980 = vdwg.mxu0
    %v981 = vmax.f32 %v855, 0.0
    %v982 = vmax.f32 %v858, 0.0
    %v983 = vmax.f32 %v863, 0.0
    %v984 = vmax.f32 %v866, 0.0
    %v985 = vmax.f32 %v871, 0.0
    %v986 = vmax.f32 %v874, 0.0
    %v987 = vmax.f32 %v879, 0.0
    %v988 = vmax.f32 %v882, 0.0
    %v989 = vmax.f32 %v887, 0.0
    %v990 = vmax.f32 %v890, 0.0
    %v991 = vmax.f32 %v895, 0.0
    %v992 = vmax.f32 %v898, 0.0
    %v993 = vmax.f32 %v903, 0.0
    %v994 = vmax.f32 %v906, 0.0
    %v995 = vmax.f32 %v911, 0.0
    %v996 = vmax.f32 %v914, 0.0
    %v997 = vmax.f32 %v919, 0.0
    %v998 = vmax.f32 %v922, 0.0
    %v999 = vmax.f32 %v927, 0.0
    %v1000 = vmax.f32 %v930, 0.0
    %v1001 = vmax.f32 %v935, 0.0
    %v1002 = vmax.f32 %v938, 0.0
    %v1003 = vmax.f32 %v943, 0.0
    %v1004 = vmax.f32 %v946, 0.0
    %v1005 = vmax.f32 %v951, 0.0
    %v1006 = vmax.f32 %v954, 0.0
    %v1007 = vmax.f32 %v959, 0.0
    %v1008 = vmax.f32 %v962, 0.0
    %v1009 = vmax.f32 %v967, 0.0
    %v1010 = vmax.f32 %v970, 0.0
    %v1011 = vmax.f32 %v975, 0.0
    %v1012 = vmax.f32 %v978, 0.0
    %v1013 = vpack.c.bf16 %v982, %v981
    %v1014 = vpack.c.bf16 %v984, %v983
    %v1015 = vpack.c.bf16 %v986, %v985
    %v1016 = vpack.c.bf16 %v988, %v987
    %v1017 = vpack.c.bf16 %v990, %v989
    %v1018 = vpack.c.bf16 %v992, %v991
    %v1019 = vpack.c.bf16 %v994, %v993
    %v1020 = vpack.c.bf16 %v996, %v995
    %v1021 = vpack.c.bf16 %v998, %v997
    %v1022 = vpack.c.bf16 %v1000, %v999
    %v1023 = vpack.c.bf16 %v1002, %v1001
    %v1024 = vpack.c.bf16 %v1004, %v1003
    %v1025 = vpack.c.bf16 %v1006, %v1005
    %v1026 = vpack.c.bf16 %v1008, %v1007
    %v1027 = vpack.c.bf16 %v1010, %v1009
    %v1028 = vpack.c.bf16 %v1012, %v1011
    %s1029 = scalar_lea.vmem [#allocation5], 192
    %v1030 = vld [vmem:[%s1029] sm:$0xf]
    %v1031 = vld [vmem:[%s1029 + $0x4] sm:$0xf]
    %v1032 = vld [vmem:[%s1029 + $0x8] sm:$0xf]
    %v1033 = vld [vmem:[%s1029 + $0xc] sm:$0xf]
    %v1034 = vld [vmem:[%s1029 + $0x10] sm:$0xf]
    %v1035 = vld [vmem:[%s1029 + $0x14] sm:$0xf]
    %v1036 = vld [vmem:[%s1029 + $0x18] sm:$0xf]
    %v1037 = vld [vmem:[%s1029 + $0x1c] sm:$0xf]
    %v1038 = vld [vmem:[%s1029 + $0x20] sm:$0xf]
    %v1039 = vld [vmem:[%s1029 + $0x24] sm:$0xf]
    %v1040 = vld [vmem:[%s1029 + $0x28] sm:$0xf]
    %v1041 = vld [vmem:[%s1029 + $0x2c] sm:$0xf]
    %v1042 = vld [vmem:[%s1029 + $0x30] sm:$0xf]
    %v1043 = vld [vmem:[%s1029 + $0x34] sm:$0xf]
    %v1044 = vld [vmem:[%s1029 + $0x38] sm:$0xf]
    %v1045 = vld [vmem:[%s1029 + $0x3c] sm:$0xf]
    %s1046 = scalar_lea.vmem [#allocation7], 3
    %v1047 = vld [vmem:[%s1046] sm:$0x1]
    %v1049 = vlaneseq
    %v1050 = vshrl.u32 %v1049, 7
    %v1051 = vsub.s32 0, %v1050
    %v1052 = vrot.slane %v1047, %v1051
    %v1070 = vunpack.c.l.b16 %v1030
    %v1071 = vunpack.c.l.b16 %v1031
    %v1072 = vunpack.c.l.b16 %v1032
    %v1073 = vunpack.c.l.b16 %v1033
    %v1074 = vunpack.c.l.b16 %v1034
    %v1075 = vunpack.c.l.b16 %v1035
    %v1076 = vunpack.c.l.b16 %v1036
    %v1077 = vunpack.c.l.b16 %v1037
    %v1078 = vunpack.c.l.b16 %v1038
    %v1079 = vunpack.c.l.b16 %v1039
    %v1080 = vunpack.c.l.b16 %v1040
    %v1081 = vunpack.c.l.b16 %v1041
    %v1082 = vunpack.c.l.b16 %v1042
    %v1083 = vunpack.c.l.b16 %v1043
    %v1084 = vunpack.c.l.b16 %v1044
    %v1085 = vunpack.c.l.b16 %v1045
    %v1086 = vpack.c.b16 %v1071, %v1070
    %v1087 = vpack.c.b16 %v1073, %v1072
    %v1088 = vpack.c.b16 %v1075, %v1074
    %v1089 = vpack.c.b16 %v1077, %v1076
    %v1090 = vpack.c.b16 %v1079, %v1078
    %v1091 = vpack.c.b16 %v1081, %v1080
    %v1092 = vpack.c.b16 %v1083, %v1082
    %v1093 = vpack.c.b16 %v1085, %v1084
    %1102 = vmatprep.subr.bf16.mxu0 0
    %1103 = vmatpush1.bf16.msra.mxu0 %v1093
    %1104 = vmatprep.subr.bf16.mxu0 0
    %1105 = vmatpush1.bf16.msra.mxu0 %v1092
    %1106 = vmatprep.subr.bf16.mxu0 0
    %1107 = vmatpush1.bf16.msra.mxu0 %v1091
    %1108 = vmatprep.subr.bf16.mxu0 0
    %1109 = vmatpush1.bf16.msra.mxu0 %v1090
    %1110 = vmatprep.subr.bf16.mxu0 0
    %1111 = vmatpush1.bf16.msra.mxu0 %v1089
    %1112 = vmatprep.subr.bf16.mxu0 0
    %1113 = vmatpush1.bf16.msra.mxu0 %v1088
    %1114 = vmatprep.subr.bf16.mxu0 0
    %1115 = vmatpush1.bf16.msra.mxu0 %v1087
    %1116 = vmatprep.subr.bf16.mxu0 0
    %1117 = vmatpush1.bf16.msra.mxu0 %v1086
    %1118 = vmatprep.subr.bf16.mxu0 0
    %1119 = vmatpush2.bf16.msra.mxu0 0
    %1120 = vmatprep.subr.bf16.mxu0 0
    %1121 = vmatpush2.bf16.msra.mxu0 0
    %1122 = vmatprep.subr.bf16.mxu0 0
    %1123 = vmatpush2.bf16.msra.mxu0 0
    %1124 = vmatprep.subr.bf16.mxu0 0
    %1125 = vmatpush2.bf16.msra.mxu0 0
    %1126 = vmatprep.subr.bf16.mxu0 0
    %1127 = vmatpush2.bf16.msra.mxu0 0
    %1128 = vmatprep.subr.bf16.mxu0 0
    %1129 = vmatpush2.bf16.msra.mxu0 0
    %1130 = vmatprep.subr.bf16.mxu0 0
    %1131 = vmatpush2.bf16.msra.mxu0 0
    %1132 = vmatprep.subr.bf16.mxu0 0
    %1133 = vmatpush2.bf16.msra.mxu0 0
    %1134 = vmatprep.mubr.bf16.mxu0 0
    %1135 = vmatmul.mubr.bf16.gmra.mxu0 %v1013
    %v1136 = vpop.f32.mrf.mxu0
    %v1137 = vadd.f32 %v1052, %v1136
    %v1138 = vpop.f32.mrf.mxu0
    %v1139 = vpop.f32.mrf.mxu0
    %v1140 = vadd.f32 %v1052, %v1139
    %v1141 = vpop.f32.mrf.mxu0
    %1142 = vmatprep.mubr.bf16.mxu0 0
    %1143 = vmatmul.mubr.bf16.gmra.mxu0 %v1014
    %v1144 = vpop.f32.mrf.mxu0
    %v1145 = vadd.f32 %v1052, %v1144
    %v1146 = vpop.f32.mrf.mxu0
    %v1147 = vpop.f32.mrf.mxu0
    %v1148 = vadd.f32 %v1052, %v1147
    %v1149 = vpop.f32.mrf.mxu0
    %1150 = vmatprep.mubr.bf16.mxu0 0
    %1151 = vmatmul.mubr.bf16.gmra.mxu0 %v1015
    %v1152 = vpop.f32.mrf.mxu0
    %v1153 = vadd.f32 %v1052, %v1152
    %v1154 = vpop.f32.mrf.mxu0
    %v1155 = vpop.f32.mrf.mxu0
    %v1156 = vadd.f32 %v1052, %v1155
    %v1157 = vpop.f32.mrf.mxu0
    %1158 = vmatprep.mubr.bf16.mxu0 0
    %1159 = vmatmul.mubr.bf16.gmra.mxu0 %v1016
    %v1160 = vpop.f32.mrf.mxu0
    %v1161 = vadd.f32 %v1052, %v1160
    %v1162 = vpop.f32.mrf.mxu0
    %v1163 = vpop.f32.mrf.mxu0
    %v1164 = vadd.f32 %v1052, %v1163
    %v1165 = vpop.f32.mrf.mxu0
    %1166 = vmatprep.mubr.bf16.mxu0 0
    %1167 = vmatmul.mubr.bf16.gmra.mxu0 %v1017
    %v1168 = vpop.f32.mrf.mxu0
    %v1169 = vadd.f32 %v1052, %v1168
    %v1170 = vpop.f32.mrf.mxu0
    %v1171 = vpop.f32.mrf.mxu0
    %v1172 = vadd.f32 %v1052, %v1171
    %v1173 = vpop.f32.mrf.mxu0
    %1174 = vmatprep.mubr.bf16.mxu0 0
    %1175 = vmatmul.mubr.bf16.gmra.mxu0 %v1018
    %v1176 = vpop.f32.mrf.mxu0
    %v1177 = vadd.f32 %v1052, %v1176
    %v1178 = vpop.f32.mrf.mxu0
    %v1179 = vpop.f32.mrf.mxu0
    %v1180 = vadd.f32 %v1052, %v1179
    %v1181 = vpop.f32.mrf.mxu0
    %1182 = vmatprep.mubr.bf16.mxu0 0
    %1183 = vmatmul.mubr.bf16.gmra.mxu0 %v1019
    %v1184 = vpop.f32.mrf.mxu0
    %v1185 = vadd.f32 %v1052, %v1184
    %v1186 = vpop.f32.mrf.mxu0
    %v1187 = vpop.f32.mrf.mxu0
    %v1188 = vadd.f32 %v1052, %v1187
    %v1189 = vpop.f32.mrf.mxu0
    %1190 = vmatprep.mubr.bf16.mxu0 0
    %1191 = vmatmul.mubr.bf16.gmra.mxu0 %v1020
    %v1192 = vpop.f32.mrf.mxu0
    %v1193 = vadd.f32 %v1052, %v1192
    %v1194 = vpop.f32.mrf.mxu0
    %v1195 = vpop.f32.mrf.mxu0
    %v1196 = vadd.f32 %v1052, %v1195
    %v1197 = vpop.f32.mrf.mxu0
    %1198 = vmatprep.mubr.bf16.mxu0 0
    %1199 = vmatmul.mubr.bf16.gmra.mxu0 %v1021
    %v1200 = vpop.f32.mrf.mxu0
    %v1201 = vadd.f32 %v1052, %v1200
    %v1202 = vpop.f32.mrf.mxu0
    %v1203 = vpop.f32.mrf.mxu0
    %v1204 = vadd.f32 %v1052, %v1203
    %v1205 = vpop.f32.mrf.mxu0
    %1206 = vmatprep.mubr.bf16.mxu0 0
    %1207 = vmatmul.mubr.bf16.gmra.mxu0 %v1022
    %v1208 = vpop.f32.mrf.mxu0
    %v1209 = vadd.f32 %v1052, %v1208
    %v1210 = vpop.f32.mrf.mxu0
    %v1211 = vpop.f32.mrf.mxu0
    %v1212 = vadd.f32 %v1052, %v1211
    %v1213 = vpop.f32.mrf.mxu0
    %1214 = vmatprep.mubr.bf16.mxu0 0
    %1215 = vmatmul.mubr.bf16.gmra.mxu0 %v1023
    %v1216 = vpop.f32.mrf.mxu0
    %v1217 = vadd.f32 %v1052, %v1216
    %v1218 = vpop.f32.mrf.mxu0
    %v1219 = vpop.f32.mrf.mxu0
    %v1220 = vadd.f32 %v1052, %v1219
    %v1221 = vpop.f32.mrf.mxu0
    %1222 = vmatprep.mubr.bf16.mxu0 0
    %1223 = vmatmul.mubr.bf16.gmra.mxu0 %v1024
    %v1224 = vpop.f32.mrf.mxu0
    %v1225 = vadd.f32 %v1052, %v1224
    %v1226 = vpop.f32.mrf.mxu0
    %v1227 = vpop.f32.mrf.mxu0
    %v1228 = vadd.f32 %v1052, %v1227
    %v1229 = vpop.f32.mrf.mxu0
    %1230 = vmatprep.mubr.bf16.mxu0 0
    %1231 = vmatmul.mubr.bf16.gmra.mxu0 %v1025
    %v1232 = vpop.f32.mrf.mxu0
    %v1233 = vadd.f32 %v1052, %v1232
    %v1234 = vpop.f32.mrf.mxu0
    %v1235 = vpop.f32.mrf.mxu0
    %v1236 = vadd.f32 %v1052, %v1235
    %v1237 = vpop.f32.mrf.mxu0
    %1238 = vmatprep.mubr.bf16.mxu0 0
    %1239 = vmatmul.mubr.bf16.gmra.mxu0 %v1026
    %v1240 = vpop.f32.mrf.mxu0
    %v1241 = vadd.f32 %v1052, %v1240
    %v1242 = vpop.f32.mrf.mxu0
    %v1243 = vpop.f32.mrf.mxu0
    %v1244 = vadd.f32 %v1052, %v1243
    %v1245 = vpop.f32.mrf.mxu0
    %1246 = vmatprep.mubr.bf16.mxu0 0
    %1247 = vmatmul.mubr.bf16.gmra.mxu0 %v1027
    %v1248 = vpop.f32.mrf.mxu0
    %v1249 = vadd.f32 %v1052, %v1248
    %v1250 = vpop.f32.mrf.mxu0
    %v1251 = vpop.f32.mrf.mxu0
    %v1252 = vadd.f32 %v1052, %v1251
    %v1253 = vpop.f32.mrf.mxu0
    %1254 = vmatprep.mubr.bf16.mxu0 0
    %1255 = vmatmul.mubr.bf16.gmra.mxu0 %v1028
    %v1256 = vpop.f32.mrf.mxu0
    %v1257 = vadd.f32 %v1052, %v1256
    %v1258 = vpop.f32.mrf.mxu0
    %v1259 = vpop.f32.mrf.mxu0
    %v1260 = vadd.f32 %v1052, %v1259
    %v1261 = vpop.f32.mrf.mxu0
    %1262 = vdwg.mxu0
    %v1263 = vlaneseq
    %v1264 = vand.u32 %v1263, 127
    %vm1265 = vcmp.lt.s32.totalorder %v1264, 8
    %v1266 = vsel %vm1265, %v1137, -1e+30
    %v1267 = vsel %vm1265, %v1140, -1e+30
    %v1268 = vsel %vm1265, %v1145, -1e+30
    %v1269 = vsel %vm1265, %v1148, -1e+30
    %v1270 = vsel %vm1265, %v1153, -1e+30
    %v1271 = vsel %vm1265, %v1156, -1e+30
    %v1272 = vsel %vm1265, %v1161, -1e+30
    %v1273 = vsel %vm1265, %v1164, -1e+30
    %v1274 = vsel %vm1265, %v1169, -1e+30
    %v1275 = vsel %vm1265, %v1172, -1e+30
    %v1276 = vsel %vm1265, %v1177, -1e+30
    %v1277 = vsel %vm1265, %v1180, -1e+30
    %v1278 = vsel %vm1265, %v1185, -1e+30
    %v1279 = vsel %vm1265, %v1188, -1e+30
    %v1280 = vsel %vm1265, %v1193, -1e+30
    %v1281 = vsel %vm1265, %v1196, -1e+30
    %v1282 = vsel %vm1265, %v1201, -1e+30
    %v1283 = vsel %vm1265, %v1204, -1e+30
    %v1284 = vsel %vm1265, %v1209, -1e+30
    %v1285 = vsel %vm1265, %v1212, -1e+30
    %v1286 = vsel %vm1265, %v1217, -1e+30
    %v1287 = vsel %vm1265, %v1220, -1e+30
    %v1288 = vsel %vm1265, %v1225, -1e+30
    %v1289 = vsel %vm1265, %v1228, -1e+30
    %v1290 = vsel %vm1265, %v1233, -1e+30
    %v1291 = vsel %vm1265, %v1236, -1e+30
    %v1292 = vsel %vm1265, %v1241, -1e+30
    %v1293 = vsel %vm1265, %v1244, -1e+30
    %v1294 = vsel %vm1265, %v1249, -1e+30
    %v1295 = vsel %vm1265, %v1252, -1e+30
    %v1296 = vsel %vm1265, %v1257, -1e+30
    %v1297 = vsel %vm1265, %v1260, -1e+30
    %1298 = vmax.xlane.f32.xlu0 %v1266
    %v1299 = vpop.xlane.xlu0 %1298
    %1300 = vmax.xlane.f32.xlu0 %v1267
    %v1301 = vpop.xlane.xlu0 %1300
    %1302 = vmax.xlane.f32.xlu0 %v1268
    %v1303 = vpop.xlane.xlu0 %1302
    %1304 = vmax.xlane.f32.xlu0 %v1269
    %v1305 = vpop.xlane.xlu0 %1304
    %1306 = vmax.xlane.f32.xlu0 %v1270
    %v1307 = vpop.xlane.xlu0 %1306
    %1308 = vmax.xlane.f32.xlu0 %v1271
    %v1309 = vpop.xlane.xlu0 %1308
    %1310 = vmax.xlane.f32.xlu0 %v1272
    %v1311 = vpop.xlane.xlu0 %1310
    %1312 = vmax.xlane.f32.xlu0 %v1273
    %v1313 = vpop.xlane.xlu0 %1312
    %1314 = vmax.xlane.f32.xlu0 %v1274
    %v1315 = vpop.xlane.xlu0 %1314
    %1316 = vmax.xlane.f32.xlu0 %v1275
    %v1317 = vpop.xlane.xlu0 %1316
    %1318 = vmax.xlane.f32.xlu0 %v1276
    %v1319 = vpop.xlane.xlu0 %1318
    %1320 = vmax.xlane.f32.xlu0 %v1277
    %v1321 = vpop.xlane.xlu0 %1320
    %1322 = vmax.xlane.f32.xlu0 %v1278
    %v1323 = vpop.xlane.xlu0 %1322
    %1324 = vmax.xlane.f32.xlu0 %v1279
    %v1325 = vpop.xlane.xlu0 %1324
    %1326 = vmax.xlane.f32.xlu0 %v1280
    %v1327 = vpop.xlane.xlu0 %1326
    %1328 = vmax.xlane.f32.xlu0 %v1281
    %v1329 = vpop.xlane.xlu0 %1328
    %1330 = vmax.xlane.f32.xlu0 %v1282
    %v1331 = vpop.xlane.xlu0 %1330
    %1332 = vmax.xlane.f32.xlu0 %v1283
    %v1333 = vpop.xlane.xlu0 %1332
    %1334 = vmax.xlane.f32.xlu0 %v1284
    %v1335 = vpop.xlane.xlu0 %1334
    %1336 = vmax.xlane.f32.xlu0 %v1285
    %v1337 = vpop.xlane.xlu0 %1336
    %1338 = vmax.xlane.f32.xlu0 %v1286
    %v1339 = vpop.xlane.xlu0 %1338
    %1340 = vmax.xlane.f32.xlu0 %v1287
    %v1341 = vpop.xlane.xlu0 %1340
    %1342 = vmax.xlane.f32.xlu0 %v1288
    %v1343 = vpop.xlane.xlu0 %1342
    %1344 = vmax.xlane.f32.xlu0 %v1289
    %v1345 = vpop.xlane.xlu0 %1344
    %1346 = vmax.xlane.f32.xlu0 %v1290
    %v1347 = vpop.xlane.xlu0 %1346
    %1348 = vmax.xlane.f32.xlu0 %v1291
    %v1349 = vpop.xlane.xlu0 %1348
    %1350 = vmax.xlane.f32.xlu0 %v1292
    %v1351 = vpop.xlane.xlu0 %1350
    %1352 = vmax.xlane.f32.xlu0 %v1293
    %v1353 = vpop.xlane.xlu0 %1352
    %1354 = vmax.xlane.f32.xlu0 %v1294
    %v1355 = vpop.xlane.xlu0 %1354
    %1356 = vmax.xlane.f32.xlu0 %v1295
    %v1357 = vpop.xlane.xlu0 %1356
    %1358 = vmax.xlane.f32.xlu0 %v1296
    %v1359 = vpop.xlane.xlu0 %1358
    %1360 = vmax.xlane.f32.xlu0 %v1297
    %v1361 = vpop.xlane.xlu0 %1360
    %v1362 = vsub.f32 %v1266, %v1299
    %v1363 = vsub.f32 %v1267, %v1301
    %v1364 = vsub.f32 %v1268, %v1303
    %v1365 = vsub.f32 %v1269, %v1305
    %v1366 = vsub.f32 %v1270, %v1307
    %v1367 = vsub.f32 %v1271, %v1309
    %v1368 = vsub.f32 %v1272, %v1311
    %v1369 = vsub.f32 %v1273, %v1313
    %v1370 = vsub.f32 %v1274, %v1315
    %v1371 = vsub.f32 %v1275, %v1317
    %v1372 = vsub.f32 %v1276, %v1319
    %v1373 = vsub.f32 %v1277, %v1321
    %v1374 = vsub.f32 %v1278, %v1323
    %v1375 = vsub.f32 %v1279, %v1325
    %v1376 = vsub.f32 %v1280, %v1327
    %v1377 = vsub.f32 %v1281, %v1329
    %v1378 = vsub.f32 %v1282, %v1331
    %v1379 = vsub.f32 %v1283, %v1333
    %v1380 = vsub.f32 %v1284, %v1335
    %v1381 = vsub.f32 %v1285, %v1337
    %v1382 = vsub.f32 %v1286, %v1339
    %v1383 = vsub.f32 %v1287, %v1341
    %v1384 = vsub.f32 %v1288, %v1343
    %v1385 = vsub.f32 %v1289, %v1345
    %v1386 = vsub.f32 %v1290, %v1347
    %v1387 = vsub.f32 %v1291, %v1349
    %v1388 = vsub.f32 %v1292, %v1351
    %v1389 = vsub.f32 %v1293, %v1353
    %v1390 = vsub.f32 %v1294, %v1355
    %v1391 = vsub.f32 %v1295, %v1357
    %v1392 = vsub.f32 %v1296, %v1359
    %v1393 = vsub.f32 %v1297, %v1361
    %v1394 = vmul.f32 %v1362, 1.442695
    %v1395 = vpow.pop %v1394
    %v1396 = vmul.f32 %v1363, 1.442695
    %v1397 = vpow.pop %v1396
    %v1398 = vmul.f32 %v1364, 1.442695
    %v1399 = vpow.pop %v1398
    %v1400 = vmul.f32 %v1365, 1.442695
    %v1401 = vpow.pop %v1400
    %v1402 = vmul.f32 %v1366, 1.442695
    %v1403 = vpow.pop %v1402
    %v1404 = vmul.f32 %v1367, 1.442695
    %v1405 = vpow.pop %v1404
    %v1406 = vmul.f32 %v1368, 1.442695
    %v1407 = vpow.pop %v1406
    %v1408 = vmul.f32 %v1369, 1.442695
    %v1409 = vpow.pop %v1408
    %v1410 = vmul.f32 %v1370, 1.442695
    %v1411 = vpow.pop %v1410
    %v1412 = vmul.f32 %v1371, 1.442695
    %v1413 = vpow.pop %v1412
    %v1414 = vmul.f32 %v1372, 1.442695
    %v1415 = vpow.pop %v1414
    %v1416 = vmul.f32 %v1373, 1.442695
    %v1417 = vpow.pop %v1416
    %v1418 = vmul.f32 %v1374, 1.442695
    %v1419 = vpow.pop %v1418
    %v1420 = vmul.f32 %v1375, 1.442695
    %v1421 = vpow.pop %v1420
    %v1422 = vmul.f32 %v1376, 1.442695
    %v1423 = vpow.pop %v1422
    %v1424 = vmul.f32 %v1377, 1.442695
    %v1425 = vpow.pop %v1424
    %v1426 = vmul.f32 %v1378, 1.442695
    %v1427 = vpow.pop %v1426
    %v1428 = vmul.f32 %v1379, 1.442695
    %v1429 = vpow.pop %v1428
    %v1430 = vmul.f32 %v1380, 1.442695
    %v1431 = vpow.pop %v1430
    %v1432 = vmul.f32 %v1381, 1.442695
    %v1433 = vpow.pop %v1432
    %v1434 = vmul.f32 %v1382, 1.442695
    %v1435 = vpow.pop %v1434
    %v1436 = vmul.f32 %v1383, 1.442695
    %v1437 = vpow.pop %v1436
    %v1438 = vmul.f32 %v1384, 1.442695
    %v1439 = vpow.pop %v1438
    %v1440 = vmul.f32 %v1385, 1.442695
    %v1441 = vpow.pop %v1440
    %v1442 = vmul.f32 %v1386, 1.442695
    %v1443 = vpow.pop %v1442
    %v1444 = vmul.f32 %v1387, 1.442695
    %v1445 = vpow.pop %v1444
    %v1446 = vmul.f32 %v1388, 1.442695
    %v1447 = vpow.pop %v1446
    %v1448 = vmul.f32 %v1389, 1.442695
    %v1449 = vpow.pop %v1448
    %v1450 = vmul.f32 %v1390, 1.442695
    %v1451 = vpow.pop %v1450
    %v1452 = vmul.f32 %v1391, 1.442695
    %v1453 = vpow.pop %v1452
    %v1454 = vmul.f32 %v1392, 1.442695
    %v1455 = vpow.pop %v1454
    %v1456 = vmul.f32 %v1393, 1.442695
    %v1457 = vpow.pop %v1456
    %1458 = vadd.xlane.f32.xlu0 %v1395
    %v1459 = vpop.xlane.xlu0 %1458
    %1460 = vadd.xlane.f32.xlu0 %v1397
    %v1461 = vpop.xlane.xlu0 %1460
    %1462 = vadd.xlane.f32.xlu0 %v1399
    %v1463 = vpop.xlane.xlu0 %1462
    %1464 = vadd.xlane.f32.xlu0 %v1401
    %v1465 = vpop.xlane.xlu0 %1464
    %1466 = vadd.xlane.f32.xlu0 %v1403
    %v1467 = vpop.xlane.xlu0 %1466
    %1468 = vadd.xlane.f32.xlu0 %v1405
    %v1469 = vpop.xlane.xlu0 %1468
    %1470 = vadd.xlane.f32.xlu0 %v1407
    %v1471 = vpop.xlane.xlu0 %1470
    %1472 = vadd.xlane.f32.xlu0 %v1409
    %v1473 = vpop.xlane.xlu0 %1472
    %1474 = vadd.xlane.f32.xlu0 %v1411
    %v1475 = vpop.xlane.xlu0 %1474
    %1476 = vadd.xlane.f32.xlu0 %v1413
    %v1477 = vpop.xlane.xlu0 %1476
    %1478 = vadd.xlane.f32.xlu0 %v1415
    %v1479 = vpop.xlane.xlu0 %1478
    %1480 = vadd.xlane.f32.xlu0 %v1417
    %v1481 = vpop.xlane.xlu0 %1480
    %1482 = vadd.xlane.f32.xlu0 %v1419
    %v1483 = vpop.xlane.xlu0 %1482
    %1484 = vadd.xlane.f32.xlu0 %v1421
    %v1485 = vpop.xlane.xlu0 %1484
    %1486 = vadd.xlane.f32.xlu0 %v1423
    %v1487 = vpop.xlane.xlu0 %1486
    %1488 = vadd.xlane.f32.xlu0 %v1425
    %v1489 = vpop.xlane.xlu0 %1488
    %1490 = vadd.xlane.f32.xlu0 %v1427
    %v1491 = vpop.xlane.xlu0 %1490
    %1492 = vadd.xlane.f32.xlu0 %v1429
    %v1493 = vpop.xlane.xlu0 %1492
    %1494 = vadd.xlane.f32.xlu0 %v1431
    %v1495 = vpop.xlane.xlu0 %1494
    %1496 = vadd.xlane.f32.xlu0 %v1433
    %v1497 = vpop.xlane.xlu0 %1496
    %1498 = vadd.xlane.f32.xlu0 %v1435
    %v1499 = vpop.xlane.xlu0 %1498
    %1500 = vadd.xlane.f32.xlu0 %v1437
    %v1501 = vpop.xlane.xlu0 %1500
    %1502 = vadd.xlane.f32.xlu0 %v1439
    %v1503 = vpop.xlane.xlu0 %1502
    %1504 = vadd.xlane.f32.xlu0 %v1441
    %v1505 = vpop.xlane.xlu0 %1504
    %1506 = vadd.xlane.f32.xlu0 %v1443
    %v1507 = vpop.xlane.xlu0 %1506
    %1508 = vadd.xlane.f32.xlu0 %v1445
    %v1509 = vpop.xlane.xlu0 %1508
    %1510 = vadd.xlane.f32.xlu0 %v1447
    %v1511 = vpop.xlane.xlu0 %1510
    %1512 = vadd.xlane.f32.xlu0 %v1449
    %v1513 = vpop.xlane.xlu0 %1512
    %1514 = vadd.xlane.f32.xlu0 %v1451
    %v1515 = vpop.xlane.xlu0 %1514
    %1516 = vadd.xlane.f32.xlu0 %v1453
    %v1517 = vpop.xlane.xlu0 %1516
    %1518 = vadd.xlane.f32.xlu0 %v1455
    %v1519 = vpop.xlane.xlu0 %1518
    %1520 = vadd.xlane.f32.xlu0 %v1457
    %v1521 = vpop.xlane.xlu0 %1520
    %v1522 = vrcp.pop %v1459
    %v1523 = vmul.f32 %v1395, %v1522
    %v1524 = vrcp.pop %v1461
    %v1525 = vmul.f32 %v1397, %v1524
    %v1526 = vrcp.pop %v1463
    %v1527 = vmul.f32 %v1399, %v1526
    %v1528 = vrcp.pop %v1465
    %v1529 = vmul.f32 %v1401, %v1528
    %v1530 = vrcp.pop %v1467
    %v1531 = vmul.f32 %v1403, %v1530
    %v1532 = vrcp.pop %v1469
    %v1533 = vmul.f32 %v1405, %v1532
    %v1534 = vrcp.pop %v1471
    %v1535 = vmul.f32 %v1407, %v1534
    %v1536 = vrcp.pop %v1473
    %v1537 = vmul.f32 %v1409, %v1536
    %v1538 = vrcp.pop %v1475
    %v1539 = vmul.f32 %v1411, %v1538
    %v1540 = vrcp.pop %v1477
    %v1541 = vmul.f32 %v1413, %v1540
    %v1542 = vrcp.pop %v1479
    %v1543 = vmul.f32 %v1415, %v1542
    %v1544 = vrcp.pop %v1481
    %v1545 = vmul.f32 %v1417, %v1544
    %v1546 = vrcp.pop %v1483
    %v1547 = vmul.f32 %v1419, %v1546
    %v1548 = vrcp.pop %v1485
    %v1549 = vmul.f32 %v1421, %v1548
    %v1550 = vrcp.pop %v1487
    %v1551 = vmul.f32 %v1423, %v1550
    %v1552 = vrcp.pop %v1489
    %v1553 = vmul.f32 %v1425, %v1552
    %v1554 = vrcp.pop %v1491
    %v1555 = vmul.f32 %v1427, %v1554
    %v1556 = vrcp.pop %v1493
    %v1557 = vmul.f32 %v1429, %v1556
    %v1558 = vrcp.pop %v1495
    %v1559 = vmul.f32 %v1431, %v1558
    %v1560 = vrcp.pop %v1497
    %v1561 = vmul.f32 %v1433, %v1560
    %v1562 = vrcp.pop %v1499
    %v1563 = vmul.f32 %v1435, %v1562
    %v1564 = vrcp.pop %v1501
    %v1565 = vmul.f32 %v1437, %v1564
    %v1566 = vrcp.pop %v1503
    %v1567 = vmul.f32 %v1439, %v1566
    %v1568 = vrcp.pop %v1505
    %v1569 = vmul.f32 %v1441, %v1568
    %v1570 = vrcp.pop %v1507
    %v1571 = vmul.f32 %v1443, %v1570
    %v1572 = vrcp.pop %v1509
    %v1573 = vmul.f32 %v1445, %v1572
    %v1574 = vrcp.pop %v1511
    %v1575 = vmul.f32 %v1447, %v1574
    %v1576 = vrcp.pop %v1513
    %v1577 = vmul.f32 %v1449, %v1576
    %v1578 = vrcp.pop %v1515
    %v1579 = vmul.f32 %v1451, %v1578
    %v1580 = vrcp.pop %v1517
    %v1581 = vmul.f32 %v1453, %v1580
    %v1582 = vrcp.pop %v1519
    %v1583 = vmul.f32 %v1455, %v1582
    %v1584 = vrcp.pop %v1521
    %v1585 = vmul.f32 %v1457, %v1584
    %v1586 = vpack.c.bf16 %v1525, %v1523
    %v1587 = vpack.c.bf16 %v1529, %v1527
    %v1588 = vpack.c.bf16 %v1533, %v1531
    %v1589 = vpack.c.bf16 %v1537, %v1535
    %v1590 = vpack.c.bf16 %v1541, %v1539
    %v1591 = vpack.c.bf16 %v1545, %v1543
    %v1592 = vpack.c.bf16 %v1549, %v1547
    %v1593 = vpack.c.bf16 %v1553, %v1551
    %v1594 = vpack.c.bf16 %v1557, %v1555
    %v1595 = vpack.c.bf16 %v1561, %v1559
    %v1596 = vpack.c.bf16 %v1565, %v1563
    %v1597 = vpack.c.bf16 %v1569, %v1567
    %v1598 = vpack.c.bf16 %v1573, %v1571
    %v1599 = vpack.c.bf16 %v1577, %v1575
    %v1600 = vpack.c.bf16 %v1581, %v1579
    %v1601 = vpack.c.bf16 %v1585, %v1583
    %v1618 = vunpack.c.l.b16 %v1586
    %v1619 = vunpack.c.h.b16 %v1586
    %v1620 = vunpack.c.l.b16 %v1587
    %v1621 = vunpack.c.h.b16 %v1587
    %v1622 = vunpack.c.l.b16 %v1588
    %v1623 = vunpack.c.h.b16 %v1588
    %v1624 = vunpack.c.l.b16 %v1589
    %v1625 = vunpack.c.h.b16 %v1589
    %v1626 = vunpack.c.l.b16 %v1590
    %v1627 = vunpack.c.h.b16 %v1590
    %v1628 = vunpack.c.l.b16 %v1591
    %v1629 = vunpack.c.h.b16 %v1591
    %v1630 = vunpack.c.l.b16 %v1592
    %v1631 = vunpack.c.h.b16 %v1592
    %v1632 = vunpack.c.l.b16 %v1593
    %v1633 = vunpack.c.h.b16 %v1593
    %v1634 = vunpack.c.l.b16 %v1594
    %v1635 = vunpack.c.h.b16 %v1594
    %v1636 = vunpack.c.l.b16 %v1595
    %v1637 = vunpack.c.h.b16 %v1595
    %v1638 = vunpack.c.l.b16 %v1596
    %v1639 = vunpack.c.h.b16 %v1596
    %v1640 = vunpack.c.l.b16 %v1597
    %v1641 = vunpack.c.h.b16 %v1597
    %v1642 = vunpack.c.l.b16 %v1598
    %v1643 = vunpack.c.h.b16 %v1598
    %v1644 = vunpack.c.l.b16 %v1599
    %v1645 = vunpack.c.h.b16 %v1599
    %v1646 = vunpack.c.l.b16 %v1600
    %v1647 = vunpack.c.h.b16 %v1600
    %v1648 = vunpack.c.l.b16 %v1601
    %v1649 = vunpack.c.h.b16 %v1601
    %v1650 = vpack.c.b16 %v1618, %v1618
    %v1651 = vpack.c.b16 %v1619, %v1619
    %v1652 = vpack.c.b16 %v1620, %v1620
    %v1653 = vpack.c.b16 %v1621, %v1621
    %v1654 = vpack.c.b16 %v1622, %v1622
    %v1655 = vpack.c.b16 %v1623, %v1623
    %v1656 = vpack.c.b16 %v1624, %v1624
    %v1657 = vpack.c.b16 %v1625, %v1625
    %v1658 = vpack.c.b16 %v1626, %v1626
    %v1659 = vpack.c.b16 %v1627, %v1627
    %v1660 = vpack.c.b16 %v1628, %v1628
    %v1661 = vpack.c.b16 %v1629, %v1629
    %v1662 = vpack.c.b16 %v1630, %v1630
    %v1663 = vpack.c.b16 %v1631, %v1631
    %v1664 = vpack.c.b16 %v1632, %v1632
    %v1665 = vpack.c.b16 %v1633, %v1633
    %v1666 = vpack.c.b16 %v1634, %v1634
    %v1667 = vpack.c.b16 %v1635, %v1635
    %v1668 = vpack.c.b16 %v1636, %v1636
    %v1669 = vpack.c.b16 %v1637, %v1637
    %v1670 = vpack.c.b16 %v1638, %v1638
    %v1671 = vpack.c.b16 %v1639, %v1639
    %v1672 = vpack.c.b16 %v1640, %v1640
    %v1673 = vpack.c.b16 %v1641, %v1641
    %v1674 = vpack.c.b16 %v1642, %v1642
    %v1675 = vpack.c.b16 %v1643, %v1643
    %v1676 = vpack.c.b16 %v1644, %v1644
    %v1677 = vpack.c.b16 %v1645, %v1645
    %v1678 = vpack.c.b16 %v1646, %v1646
    %v1679 = vpack.c.b16 %v1647, %v1647
    %v1680 = vpack.c.b16 %v1648, %v1648
    %v1681 = vpack.c.b16 %v1649, %v1649
    %1714 = vst [vmem:[#allocation8] sm:$0xf] %v1650
    %1715 = vst [vmem:[#allocation8 + $0x4] sm:$0xf] %v1651
    %1716 = vst [vmem:[#allocation8 + $0x8] sm:$0xf] %v1652
    %1717 = vst [vmem:[#allocation8 + $0xc] sm:$0xf] %v1653
    %1718 = vst [vmem:[#allocation8 + $0x10] sm:$0xf] %v1654
    %1719 = vst [vmem:[#allocation8 + $0x14] sm:$0xf] %v1655
    %1720 = vst [vmem:[#allocation8 + $0x18] sm:$0xf] %v1656
    %1721 = vst [vmem:[#allocation8 + $0x1c] sm:$0xf] %v1657
    %1722 = vst [vmem:[#allocation8 + $0x20] sm:$0xf] %v1658
    %1723 = vst [vmem:[#allocation8 + $0x24] sm:$0xf] %v1659
    %1724 = vst [vmem:[#allocation8 + $0x28] sm:$0xf] %v1660
    %1725 = vst [vmem:[#allocation8 + $0x2c] sm:$0xf] %v1661
    %1726 = vst [vmem:[#allocation8 + $0x30] sm:$0xf] %v1662
    %1727 = vst [vmem:[#allocation8 + $0x34] sm:$0xf] %v1663
    %1728 = vst [vmem:[#allocation8 + $0x38] sm:$0xf] %v1664
    %1729 = vst [vmem:[#allocation8 + $0x3c] sm:$0xf] %v1665
    %1730 = vst [vmem:[#allocation8 + $0x40] sm:$0xf] %v1666
    %1731 = vst [vmem:[#allocation8 + $0x44] sm:$0xf] %v1667
    %1732 = vst [vmem:[#allocation8 + $0x48] sm:$0xf] %v1668
    %1733 = vst [vmem:[#allocation8 + $0x4c] sm:$0xf] %v1669
    %1734 = vst [vmem:[#allocation8 + $0x50] sm:$0xf] %v1670
    %1735 = vst [vmem:[#allocation8 + $0x54] sm:$0xf] %v1671
    %1736 = vst [vmem:[#allocation8 + $0x58] sm:$0xf] %v1672
    %1737 = vst [vmem:[#allocation8 + $0x5c] sm:$0xf] %v1673
    %1738 = vst [vmem:[#allocation8 + $0x60] sm:$0xf] %v1674
    %1739 = vst [vmem:[#allocation8 + $0x64] sm:$0xf] %v1675
    %1740 = vst [vmem:[#allocation8 + $0x68] sm:$0xf] %v1676
    %1741 = vst [vmem:[#allocation8 + $0x6c] sm:$0xf] %v1677
    %1742 = vst [vmem:[#allocation8 + $0x70] sm:$0xf] %v1678
    %1743 = vst [vmem:[#allocation8 + $0x74] sm:$0xf] %v1679
    %1744 = vst [vmem:[#allocation8 + $0x78] sm:$0xf] %v1680
    %1745 = vst [vmem:[#allocation8 + $0x7c] sm:$0xf] %v1681
    // Predicated region
    $region26: #{tpu_custom_call.1} parent=1 // pred_check
      _
    $region27: #{tpu_custom_call.1} parent=1 // pred_check_branch
      %1747 = sbr.rel (0) target = $region29
    $region28: #{tpu_custom_call.1} parent=1 // pred_region
      %s1749 = ssub.s32 2048, 2048
      %1750 = vsyncadd [#allocation4], %s1749
      %s1751 = sshll.u32 [#allocation8], 4
      %s1752 = int_to_ptr.vmem [resolvable:$true] %s1751
      %1757 = dma.vmem_to_hbm [thread:$0]  %s1752, 2048, %s3, [#allocation4], 64, 64, 4
    $region29: #{tpu_custom_call.1} parent=1 // pred_fallthru
      _
    // Predicated region
    $region30: #{tpu_custom_call.1} parent=1 // pred_check
      _
    $region31: #{tpu_custom_call.1} parent=1 // pred_check_branch
      %1759 = sbr.rel (0) target = $region33
    $region32: #{tpu_custom_call.1} parent=1 // pred_region
      %1760 = dma.done [#allocation4], 2048
    $region33: #{tpu_custom_call.1} parent=1 // pred_fallthru
      _
    %1761 = vsyncpa [#allocation3], 1
    %1762 = vsyncpa [#allocation6], 1
    %1763 = vsyncpa [#allocation4], 1

</llo_original>
